<compile_context>
chip_gen: v7x
topology: tpu7x:2x2x1
jax: 0.10.0
libtpu: 0.0.40
codegen_flags: <defaults>
</compile_context>

<pallas_src>
import jax
import jax.numpy as jnp
from jax.experimental import pallas as pl
from jax.experimental.pallas import tpu as pltpu  # noqa: F401  (kept for TPU-specific tuning hooks)

BN_EPS = 1e-5


def _fused_kernel(x_ref, w_ref, gamma_ref, beta_ref, o_ref):
    # x_ref:     (C_in, P)    pre-activation input (channels x spatial positions)
    # w_ref:     (C_out, C_in) 1x1 conv weight (torch OIHW squeezed, no transpose)
    # gamma_ref: (C_out, 1)   BN scale
    # beta_ref:  (C_out, 1)   BN shift
    # o_ref:     (C_out, P)

    # relu186
    x = jnp.maximum(x_ref[...], 0.0)

    # conv2d186: 1x1 conv == channel-mixing matmul (MXU), M = C_out = 128.
    y = jnp.dot(w_ref[...], x, preferred_element_type=jnp.float32)  # (C_out, P)

    # batchnorm2d187: training-mode batch stats (biased variance) per channel,
    # computed in a single pass over the tile.
    p = y.shape[1]
    inv_p = jnp.float32(1.0 / p)
    s1 = jnp.sum(y, axis=1, keepdims=True)        # (C_out, 1)
    s2 = jnp.sum(y * y, axis=1, keepdims=True)    # (C_out, 1)
    mean = s1 * inv_p
    var = s2 * inv_p - mean * mean
    scale = gamma_ref[...] * jax.lax.rsqrt(var + BN_EPS)   # (C_out, 1)
    shift = beta_ref[...] - mean * scale                   # (C_out, 1)

    # relu187 fused with the BN affine (one FMA + max pass)
    o_ref[...] = jnp.maximum(y * scale + shift, 0.0)


def fused_relu_conv1x1_bn_relu(x_nchw, w_oihw, gamma, beta):
    """x_nchw: (1, C_in, H, W) f32; w_oihw: (C_out, C_in, 1, 1) f32;
    gamma/beta: (C_out,) f32.  Returns (1, C_out, H, W) f32."""
    N, C_in, H, W = x_nchw.shape
    assert N == 1, "free NCHW<->(C,P) reshape path assumes batch size 1"
    C_out = w_oihw.shape[0]
    P = H * W

    # All of these are free views (no copies).
    x2d = x_nchw.reshape(C_in, P)          # (C_in, P)
    w2d = w_oihw.reshape(C_out, C_in)      # (C_out, C_in)
    gamma2d = gamma.reshape(C_out, 1)
    beta2d = beta.reshape(C_out, 1)

    out2d = pl.pallas_call(
        _fused_kernel,
        out_shape=jax.ShapeDtypeStruct((C_out, P), jnp.float32),
        in_specs=[
            pl.BlockSpec((C_in, P), lambda: (0, 0)),
            pl.BlockSpec((C_out, C_in), lambda: (0, 0)),
            pl.BlockSpec((C_out, 1), lambda: (0, 0)),
            pl.BlockSpec((C_out, 1), lambda: (0, 0)),
        ],
        out_specs=pl.BlockSpec((C_out, P), lambda: (0, 0)),
    )(x2d, w2d, gamma2d, beta2d)

    # (C_out, P) -> (1, C_out, H, W): again a free reshape.
    return out2d.reshape(N, C_out, H, W)


def _reference(x_nchw, w_oihw, gamma, beta):
    N, C_in, H, W = x_nchw.shape
    C_out = w_oihw.shape[0]
    x = jnp.maximum(x_nchw, 0.0)
    x2d = jnp.transpose(x, (0, 2, 3, 1)).reshape(-1, C_in)
    y = x2d @ jnp.transpose(w_oihw.reshape(C_out, C_in))
    mean = jnp.mean(y, axis=0, keepdims=True)
    var = jnp.mean((y - mean) ** 2, axis=0, keepdims=True)
    y = (y - mean) / jnp.sqrt(var + BN_EPS) * gamma[None, :] + beta[None, :]
    y = jnp.maximum(y, 0.0)
    return jnp.transpose(y.reshape(N, H, W, C_out), (0, 3, 1, 2))


if __name__ == "__main__":
    # Shapes implied by the module's forward: x658 = (1, 1696, 7, 7)
    N, C_in, H, W = 1, 1696, 7, 7
    C_out = 128

    key = jax.random.PRNGKey(0)
    kx, kw, kg, kb = jax.random.split(key, 4)
    x = jax.random.normal(kx, (N, C_in, H, W), dtype=jnp.float32)
    w = jax.random.normal(kw, (C_out, C_in, 1, 1), dtype=jnp.float32) * 0.02
    gamma = 1.0 + 0.1 * jax.random.normal(kg, (C_out,), dtype=jnp.float32)
    beta = 0.1 * jax.random.normal(kb, (C_out,), dtype=jnp.float32)

    out = jax.block_until_ready(fused_relu_conv1x1_bn_relu(x, w, gamma, beta))
    ref = jax.block_until_ready(_reference(x, w, gamma, beta))

    assert out.shape == (N, C_out, H, W)
    assert jnp.allclose(out, ref, atol=1e-3, rtol=1e-3)
    print("KERNEL_OK")
</pallas_src>

<mosaic_0001>
module attributes {stable_mosaic.version = 11 : i64} {
  func.func @_fused_kernel(%arg0: memref<1696x49xf32, #tpu.memory_space<vmem>>, %arg1: memref<128x1696xf32, #tpu.memory_space<vmem>>, %arg2: memref<128x1xf32, #tpu.memory_space<vmem>>, %arg3: memref<128x1xf32, #tpu.memory_space<vmem>>, %arg4: memref<128x49xf32, #tpu.memory_space<vmem>>) attributes {dimension_semantics = [], scalar_prefetch = 0 : i64, scratch_operands = 0 : i64, tpu.core_type = #tpu.core_type<tc>} {
    %c0 = arith.constant 0 : index
    %c0_0 = arith.constant 0 : index
    %0 = vector.load %arg0[%c0, %c0_0] : memref<1696x49xf32, #tpu.memory_space<vmem>>, vector<1696x49xf32>
    %cst = arith.constant 0.000000e+00 : f32
    %1 = vector.broadcast %cst : f32 to vector<1696x49xf32>
    %2 = arith.maximumf %0, %1 : vector<1696x49xf32>
    %c0_1 = arith.constant 0 : index
    %c0_2 = arith.constant 0 : index
    %3 = vector.load %arg1[%c0_1, %c0_2] : memref<128x1696xf32, #tpu.memory_space<vmem>>, vector<128x1696xf32>
    %cst_3 = arith.constant dense<0.000000e+00> : vector<128x49xf32>
    %4 = tpu.matmul %3, %2, %cst_3 {dimension_numbers = #tpu.dot_dimension_numbers<[1], [0], [0], [1], [0, 0, 1, 1], [], []>} : vector<128x1696xf32>, vector<1696x49xf32>, vector<128x49xf32> -> vector<128x49xf32>
    %cst_4 = arith.constant dense<0.000000e+00> : vector<128xf32>
    %5 = vector.multi_reduction <add>, %4, %cst_4 [1] : vector<128x49xf32> to vector<128xf32>
    %6 = vector.shape_cast %5 : vector<128xf32> to vector<128x1xf32>
    %7 = arith.mulf %4, %4 : vector<128x49xf32>
    %cst_5 = arith.constant dense<0.000000e+00> : vector<128xf32>
    %8 = vector.multi_reduction <add>, %7, %cst_5 [1] : vector<128x49xf32> to vector<128xf32>
    %9 = vector.shape_cast %8 : vector<128xf32> to vector<128x1xf32>
    %cst_6 = arith.constant 0.0204081628 : f32
    %10 = vector.broadcast %cst_6 : f32 to vector<128x1xf32>
    %11 = arith.mulf %6, %10 : vector<128x1xf32>
    %cst_7 = arith.constant 0.0204081628 : f32
    %12 = vector.broadcast %cst_7 : f32 to vector<128x1xf32>
    %13 = arith.mulf %9, %12 : vector<128x1xf32>
    %14 = arith.mulf %11, %11 : vector<128x1xf32>
    %15 = arith.subf %13, %14 : vector<128x1xf32>
    %c0_8 = arith.constant 0 : index
    %c0_9 = arith.constant 0 : index
    %16 = vector.load %arg2[%c0_8, %c0_9] : memref<128x1xf32, #tpu.memory_space<vmem>>, vector<128x1xf32>
    %cst_10 = arith.constant 9.99999974E-6 : f32
    %17 = vector.broadcast %cst_10 : f32 to vector<128x1xf32>
    %18 = arith.addf %15, %17 : vector<128x1xf32>
    %19 = math.rsqrt %18 : vector<128x1xf32>
    %20 = arith.mulf %16, %19 : vector<128x1xf32>
    %c0_11 = arith.constant 0 : index
    %c0_12 = arith.constant 0 : index
    %21 = vector.load %arg3[%c0_11, %c0_12] : memref<128x1xf32, #tpu.memory_space<vmem>>, vector<128x1xf32>
    %22 = arith.mulf %11, %20 : vector<128x1xf32>
    %23 = arith.subf %21, %22 : vector<128x1xf32>
    %24 = vector.broadcast %20 : vector<128x1xf32> to vector<128x49xf32>
    %25 = arith.mulf %4, %24 : vector<128x49xf32>
    %26 = vector.broadcast %23 : vector<128x1xf32> to vector<128x49xf32>
    %27 = arith.addf %25, %26 : vector<128x49xf32>
    %cst_13 = arith.constant 0.000000e+00 : f32
    %28 = vector.broadcast %cst_13 : f32 to vector<128x49xf32>
    %29 = arith.maximumf %27, %28 : vector<128x49xf32>
    %c0_14 = arith.constant 0 : index
    %c0_15 = arith.constant 0 : index
    %30 = vector.load %arg4[%c0_14, %c0_15] : memref<128x49xf32, #tpu.memory_space<vmem>>, vector<128x49xf32>
    tpu.vector_store %arg4[%c0_14, %c0_15], %29 {strides = array<i32>} : memref<128x49xf32, #tpu.memory_space<vmem>>, vector<128x49xf32>,
    return
  }
}

</mosaic_0001>

<llo_original>
// kernel: tpu_custom_call.1
$region0: #{tpu_custom_call.1}
  #allocation0 [shape = 'u32[]', space=smem, size = 0x4, offset = 0x4, fixed_abs, tag = 'smem constant byte address 0x4 - core index']
  #allocation1 [shape = 'u32[144,128]{1,0:T(1,128)}', space=vmem, size = 0x12000, scoped, tag = 'internal scratch']
  %s0 = inlined_call_operand.vmem [shape: f32[1696,49], index: 0, kind: input, shape index: {}]
  %s1 = inlined_call_operand.vmem [shape: f32[128,1696], index: 1, kind: input, shape index: {}]
  %s2 = inlined_call_operand.vmem [shape: f32[128,1], index: 2, kind: input, shape index: {}]
  %s3 = inlined_call_operand.vmem [shape: f32[128,1], index: 3, kind: input, shape index: {}]
  %s4 = inlined_call_operand.vmem [shape: f32[128,49], index: 4, kind: output, shape index: {}]
  %s5 = sld [smem:[#allocation0]]
  $region26: #{tpu_custom_call.1} parent=0
    _
  %s7 = ssub.s32 1, %s5
  %s8 = scalar_select 0, %s7, %s5
  // Predicated region
  $region2: #{tpu_custom_call.1} parent=0 // pred_check
    _
  $region3: #{tpu_custom_call.1} parent=0 // pred_check_branch
    %10 = sbr.rel (0) target = $region5
  $region4: #{tpu_custom_call.1} parent=0 // pred_region
    _
  $region5: #{tpu_custom_call.1} parent=0 // pred_fallthru
    _
  // Predicated region
  $region6: #{tpu_custom_call.1} parent=0 // pred_check
    _
  $region7: #{tpu_custom_call.1} parent=0 // pred_check_branch
    %12 = sbr.rel (0) target = $region9
  $region8: #{tpu_custom_call.1} parent=0 // pred_region
    _
  $region9: #{tpu_custom_call.1} parent=0 // pred_fallthru
    _
  // Predicated region
  $region10: #{tpu_custom_call.1} parent=0 // pred_check
    _
  $region11: #{tpu_custom_call.1} parent=0 // pred_check_branch
    %14 = sbr.rel (0) target = $region13
  $region12: #{tpu_custom_call.1} parent=0 // pred_region
    _
  $region13: #{tpu_custom_call.1} parent=0 // pred_fallthru
    _
  // Predicated region
  $region14: #{tpu_custom_call.1} parent=0 // pred_check
    _
  $region15: #{tpu_custom_call.1} parent=0 // pred_check_branch
    %16 = sbr.rel (0) target = $region17
  $region16: #{tpu_custom_call.1} parent=0 // pred_region
    _
  $region17: #{tpu_custom_call.1} parent=0 // pred_fallthru
    _
  %v17 = vld [vmem:[%s0] sm:$0xff]
  %v18 = vld [vmem:[%s0 + $0x8] sm:$0xff]
  %v19 = vld [vmem:[%s0 + $0x10] sm:$0xff]
  %v20 = vld [vmem:[%s0 + $0x18] sm:$0xff]
  %v21 = vld [vmem:[%s0 + $0x20] sm:$0xff]
  %v22 = vld [vmem:[%s0 + $0x28] sm:$0xff]
  %v23 = vld [vmem:[%s0 + $0x30] sm:$0xff]
  %v24 = vld [vmem:[%s0 + $0x38] sm:$0xff]
  %v25 = vld [vmem:[%s0 + $0x40] sm:$0xff]
  %v26 = vld [vmem:[%s0 + $0x48] sm:$0xff]
  %v27 = vld [vmem:[%s0 + $0x50] sm:$0xff]
  %v28 = vld [vmem:[%s0 + $0x58] sm:$0xff]
  %v29 = vld [vmem:[%s0 + $0x60] sm:$0xff]
  %v30 = vld [vmem:[%s0 + $0x68] sm:$0xff]
  %v31 = vld [vmem:[%s0 + $0x70] sm:$0xff]
  %v32 = vld [vmem:[%s0 + $0x78] sm:$0xff]
  %v33 = vld [vmem:[%s0 + $0x80] sm:$0xff]
  %v34 = vld [vmem:[%s0 + $0x88] sm:$0xff]
  %v35 = vld [vmem:[%s0 + $0x90] sm:$0xff]
  %v36 = vld [vmem:[%s0 + $0x98] sm:$0xff]
  %v37 = vld [vmem:[%s0 + $0xa0] sm:$0xff]
  %v38 = vld [vmem:[%s0 + $0xa8] sm:$0xff]
  %v39 = vld [vmem:[%s0 + $0xb0] sm:$0xff]
  %v40 = vld [vmem:[%s0 + $0xb8] sm:$0xff]
  %v41 = vld [vmem:[%s0 + $0xc0] sm:$0xff]
  %v42 = vld [vmem:[%s0 + $0xc8] sm:$0xff]
  %v43 = vld [vmem:[%s0 + $0xd0] sm:$0xff]
  %v44 = vld [vmem:[%s0 + $0xd8] sm:$0xff]
  %v45 = vld [vmem:[%s0 + $0xe0] sm:$0xff]
  %v46 = vld [vmem:[%s0 + $0xe8] sm:$0xff]
  %v47 = vld [vmem:[%s0 + $0xf0] sm:$0xff]
  %v48 = vld [vmem:[%s0 + $0xf8] sm:$0xff]
  %v49 = vld [vmem:[%s0 + $0x100] sm:$0xff]
  %v50 = vld [vmem:[%s0 + $0x108] sm:$0xff]
  %v51 = vld [vmem:[%s0 + $0x110] sm:$0xff]
  %v52 = vld [vmem:[%s0 + $0x118] sm:$0xff]
  %v53 = vld [vmem:[%s0 + $0x120] sm:$0xff]
  %v54 = vld [vmem:[%s0 + $0x128] sm:$0xff]
  %v55 = vld [vmem:[%s0 + $0x130] sm:$0xff]
  %v56 = vld [vmem:[%s0 + $0x138] sm:$0xff]
  %v57 = vld [vmem:[%s0 + $0x140] sm:$0xff]
  %v58 = vld [vmem:[%s0 + $0x148] sm:$0xff]
  %v59 = vld [vmem:[%s0 + $0x150] sm:$0xff]
  %v60 = vld [vmem:[%s0 + $0x158] sm:$0xff]
  %v61 = vld [vmem:[%s0 + $0x160] sm:$0xff]
  %v62 = vld [vmem:[%s0 + $0x168] sm:$0xff]
  %v63 = vld [vmem:[%s0 + $0x170] sm:$0xff]
  %v64 = vld [vmem:[%s0 + $0x178] sm:$0xff]
  %v65 = vld [vmem:[%s0 + $0x180] sm:$0xff]
  %v66 = vld [vmem:[%s0 + $0x188] sm:$0xff]
  %v67 = vld [vmem:[%s0 + $0x190] sm:$0xff]
  %v68 = vld [vmem:[%s0 + $0x198] sm:$0xff]
  %v69 = vld [vmem:[%s0 + $0x1a0] sm:$0xff]
  %v70 = vld [vmem:[%s0 + $0x1a8] sm:$0xff]
  %v71 = vld [vmem:[%s0 + $0x1b0] sm:$0xff]
  %v72 = vld [vmem:[%s0 + $0x1b8] sm:$0xff]
  %v73 = vld [vmem:[%s0 + $0x1c0] sm:$0xff]
  %v74 = vld [vmem:[%s0 + $0x1c8] sm:$0xff]
  %v75 = vld [vmem:[%s0 + $0x1d0] sm:$0xff]
  %v76 = vld [vmem:[%s0 + $0x1d8] sm:$0xff]
  %v77 = vld [vmem:[%s0 + $0x1e0] sm:$0xff]
  %v78 = vld [vmem:[%s0 + $0x1e8] sm:$0xff]
  %v79 = vld [vmem:[%s0 + $0x1f0] sm:$0xff]
  %v80 = vld [vmem:[%s0 + $0x1f8] sm:$0xff]
  %v81 = vld [vmem:[%s0 + $0x200] sm:$0xff]
  %v82 = vld [vmem:[%s0 + $0x208] sm:$0xff]
  %v83 = vld [vmem:[%s0 + $0x210] sm:$0xff]
  %v84 = vld [vmem:[%s0 + $0x218] sm:$0xff]
  %v85 = vld [vmem:[%s0 + $0x220] sm:$0xff]
  %v86 = vld [vmem:[%s0 + $0x228] sm:$0xff]
  %v87 = vld [vmem:[%s0 + $0x230] sm:$0xff]
  %v88 = vld [vmem:[%s0 + $0x238] sm:$0xff]
  %v89 = vld [vmem:[%s0 + $0x240] sm:$0xff]
  %v90 = vld [vmem:[%s0 + $0x248] sm:$0xff]
  %v91 = vld [vmem:[%s0 + $0x250] sm:$0xff]
  %v92 = vld [vmem:[%s0 + $0x258] sm:$0xff]
  %v93 = vld [vmem:[%s0 + $0x260] sm:$0xff]
  %v94 = vld [vmem:[%s0 + $0x268] sm:$0xff]
  %v95 = vld [vmem:[%s0 + $0x270] sm:$0xff]
  %v96 = vld [vmem:[%s0 + $0x278] sm:$0xff]
  %v97 = vld [vmem:[%s0 + $0x280] sm:$0xff]
  %v98 = vld [vmem:[%s0 + $0x288] sm:$0xff]
  %v99 = vld [vmem:[%s0 + $0x290] sm:$0xff]
  %v100 = vld [vmem:[%s0 + $0x298] sm:$0xff]
  %v101 = vld [vmem:[%s0 + $0x2a0] sm:$0xff]
  %v102 = vld [vmem:[%s0 + $0x2a8] sm:$0xff]
  %v103 = vld [vmem:[%s0 + $0x2b0] sm:$0xff]
  %v104 = vld [vmem:[%s0 + $0x2b8] sm:$0xff]
  %v105 = vld [vmem:[%s0 + $0x2c0] sm:$0xff]
  %v106 = vld [vmem:[%s0 + $0x2c8] sm:$0xff]
  %v107 = vld [vmem:[%s0 + $0x2d0] sm:$0xff]
  %v108 = vld [vmem:[%s0 + $0x2d8] sm:$0xff]
  %v109 = vld [vmem:[%s0 + $0x2e0] sm:$0xff]
  %v110 = vld [vmem:[%s0 + $0x2e8] sm:$0xff]
  %v111 = vld [vmem:[%s0 + $0x2f0] sm:$0xff]
  %v112 = vld [vmem:[%s0 + $0x2f8] sm:$0xff]
  %v113 = vld [vmem:[%s0 + $0x300] sm:$0xff]
  %v114 = vld [vmem:[%s0 + $0x308] sm:$0xff]
  %v115 = vld [vmem:[%s0 + $0x310] sm:$0xff]
  %v116 = vld [vmem:[%s0 + $0x318] sm:$0xff]
  %v117 = vld [vmem:[%s0 + $0x320] sm:$0xff]
  %v118 = vld [vmem:[%s0 + $0x328] sm:$0xff]
  %v119 = vld [vmem:[%s0 + $0x330] sm:$0xff]
  %v120 = vld [vmem:[%s0 + $0x338] sm:$0xff]
  %v121 = vld [vmem:[%s0 + $0x340] sm:$0xff]
  %v122 = vld [vmem:[%s0 + $0x348] sm:$0xff]
  %v123 = vld [vmem:[%s0 + $0x350] sm:$0xff]
  %v124 = vld [vmem:[%s0 + $0x358] sm:$0xff]
  %v125 = vld [vmem:[%s0 + $0x360] sm:$0xff]
  %v126 = vld [vmem:[%s0 + $0x368] sm:$0xff]
  %v127 = vld [vmem:[%s0 + $0x370] sm:$0xff]
  %v128 = vld [vmem:[%s0 + $0x378] sm:$0xff]
  %v129 = vld [vmem:[%s0 + $0x380] sm:$0xff]
  %v130 = vld [vmem:[%s0 + $0x388] sm:$0xff]
  %v131 = vld [vmem:[%s0 + $0x390] sm:$0xff]
  %v132 = vld [vmem:[%s0 + $0x398] sm:$0xff]
  %v133 = vld [vmem:[%s0 + $0x3a0] sm:$0xff]
  %v134 = vld [vmem:[%s0 + $0x3a8] sm:$0xff]
  %v135 = vld [vmem:[%s0 + $0x3b0] sm:$0xff]
  %v136 = vld [vmem:[%s0 + $0x3b8] sm:$0xff]
  %v137 = vld [vmem:[%s0 + $0x3c0] sm:$0xff]
  %v138 = vld [vmem:[%s0 + $0x3c8] sm:$0xff]
  %v139 = vld [vmem:[%s0 + $0x3d0] sm:$0xff]
  %v140 = vld [vmem:[%s0 + $0x3d8] sm:$0xff]
  %v141 = vld [vmem:[%s0 + $0x3e0] sm:$0xff]
  %v142 = vld [vmem:[%s0 + $0x3e8] sm:$0xff]
  %v143 = vld [vmem:[%s0 + $0x3f0] sm:$0xff]
  %v144 = vld [vmem:[%s0 + $0x3f8] sm:$0xff]
  %v145 = vld [vmem:[%s0 + $0x400] sm:$0xff]
  %v146 = vld [vmem:[%s0 + $0x408] sm:$0xff]
  %v147 = vld [vmem:[%s0 + $0x410] sm:$0xff]
  %v148 = vld [vmem:[%s0 + $0x418] sm:$0xff]
  %v149 = vld [vmem:[%s0 + $0x420] sm:$0xff]
  %v150 = vld [vmem:[%s0 + $0x428] sm:$0xff]
  %v151 = vld [vmem:[%s0 + $0x430] sm:$0xff]
  %v152 = vld [vmem:[%s0 + $0x438] sm:$0xff]
  %v153 = vld [vmem:[%s0 + $0x440] sm:$0xff]
  %v154 = vld [vmem:[%s0 + $0x448] sm:$0xff]
  %v155 = vld [vmem:[%s0 + $0x450] sm:$0xff]
  %v156 = vld [vmem:[%s0 + $0x458] sm:$0xff]
  %v157 = vld [vmem:[%s0 + $0x460] sm:$0xff]
  %v158 = vld [vmem:[%s0 + $0x468] sm:$0xff]
  %v159 = vld [vmem:[%s0 + $0x470] sm:$0xff]
  %v160 = vld [vmem:[%s0 + $0x478] sm:$0xff]
  %v161 = vld [vmem:[%s0 + $0x480] sm:$0xff]
  %v162 = vld [vmem:[%s0 + $0x488] sm:$0xff]
  %v163 = vld [vmem:[%s0 + $0x490] sm:$0xff]
  %v164 = vld [vmem:[%s0 + $0x498] sm:$0xff]
  %v165 = vld [vmem:[%s0 + $0x4a0] sm:$0xff]
  %v166 = vld [vmem:[%s0 + $0x4a8] sm:$0xff]
  %v167 = vld [vmem:[%s0 + $0x4b0] sm:$0xff]
  %v168 = vld [vmem:[%s0 + $0x4b8] sm:$0xff]
  %v169 = vld [vmem:[%s0 + $0x4c0] sm:$0xff]
  %v170 = vld [vmem:[%s0 + $0x4c8] sm:$0xff]
  %v171 = vld [vmem:[%s0 + $0x4d0] sm:$0xff]
  %v172 = vld [vmem:[%s0 + $0x4d8] sm:$0xff]
  %v173 = vld [vmem:[%s0 + $0x4e0] sm:$0xff]
  %v174 = vld [vmem:[%s0 + $0x4e8] sm:$0xff]
  %v175 = vld [vmem:[%s0 + $0x4f0] sm:$0xff]
  %v176 = vld [vmem:[%s0 + $0x4f8] sm:$0xff]
  %v177 = vld [vmem:[%s0 + $0x500] sm:$0xff]
  %v178 = vld [vmem:[%s0 + $0x508] sm:$0xff]
  %v179 = vld [vmem:[%s0 + $0x510] sm:$0xff]
  %v180 = vld [vmem:[%s0 + $0x518] sm:$0xff]
  %v181 = vld [vmem:[%s0 + $0x520] sm:$0xff]
  %v182 = vld [vmem:[%s0 + $0x528] sm:$0xff]
  %v183 = vld [vmem:[%s0 + $0x530] sm:$0xff]
  %v184 = vld [vmem:[%s0 + $0x538] sm:$0xff]
  %v185 = vld [vmem:[%s0 + $0x540] sm:$0xff]
  %v186 = vld [vmem:[%s0 + $0x548] sm:$0xff]
  %v187 = vld [vmem:[%s0 + $0x550] sm:$0xff]
  %v188 = vld [vmem:[%s0 + $0x558] sm:$0xff]
  %v189 = vld [vmem:[%s0 + $0x560] sm:$0xff]
  %v190 = vld [vmem:[%s0 + $0x568] sm:$0xff]
  %v191 = vld [vmem:[%s0 + $0x570] sm:$0xff]
  %v192 = vld [vmem:[%s0 + $0x578] sm:$0xff]
  %v193 = vld [vmem:[%s0 + $0x580] sm:$0xff]
  %v194 = vld [vmem:[%s0 + $0x588] sm:$0xff]
  %v195 = vld [vmem:[%s0 + $0x590] sm:$0xff]
  %v196 = vld [vmem:[%s0 + $0x598] sm:$0xff]
  %v197 = vld [vmem:[%s0 + $0x5a0] sm:$0xff]
  %v198 = vld [vmem:[%s0 + $0x5a8] sm:$0xff]
  %v199 = vld [vmem:[%s0 + $0x5b0] sm:$0xff]
  %v200 = vld [vmem:[%s0 + $0x5b8] sm:$0xff]
  %v201 = vld [vmem:[%s0 + $0x5c0] sm:$0xff]
  %v202 = vld [vmem:[%s0 + $0x5c8] sm:$0xff]
  %v203 = vld [vmem:[%s0 + $0x5d0] sm:$0xff]
  %v204 = vld [vmem:[%s0 + $0x5d8] sm:$0xff]
  %v205 = vld [vmem:[%s0 + $0x5e0] sm:$0xff]
  %v206 = vld [vmem:[%s0 + $0x5e8] sm:$0xff]
  %v207 = vld [vmem:[%s0 + $0x5f0] sm:$0xff]
  %v208 = vld [vmem:[%s0 + $0x5f8] sm:$0xff]
  %v209 = vld [vmem:[%s0 + $0x600] sm:$0xff]
  %v210 = vld [vmem:[%s0 + $0x608] sm:$0xff]
  %v211 = vld [vmem:[%s0 + $0x610] sm:$0xff]
  %v212 = vld [vmem:[%s0 + $0x618] sm:$0xff]
  %v213 = vld [vmem:[%s0 + $0x620] sm:$0xff]
  %v214 = vld [vmem:[%s0 + $0x628] sm:$0xff]
  %v215 = vld [vmem:[%s0 + $0x630] sm:$0xff]
  %v216 = vld [vmem:[%s0 + $0x638] sm:$0xff]
  %v217 = vld [vmem:[%s0 + $0x640] sm:$0xff]
  %v218 = vld [vmem:[%s0 + $0x648] sm:$0xff]
  %v219 = vld [vmem:[%s0 + $0x650] sm:$0xff]
  %v220 = vld [vmem:[%s0 + $0x658] sm:$0xff]
  %v221 = vld [vmem:[%s0 + $0x660] sm:$0xff]
  %v222 = vld [vmem:[%s0 + $0x668] sm:$0xff]
  %v223 = vld [vmem:[%s0 + $0x670] sm:$0xff]
  %v224 = vld [vmem:[%s0 + $0x678] sm:$0xff]
  %v225 = vld [vmem:[%s0 + $0x680] sm:$0xff]
  %v226 = vld [vmem:[%s0 + $0x688] sm:$0xff]
  %v227 = vld [vmem:[%s0 + $0x690] sm:$0xff]
  %v228 = vld [vmem:[%s0 + $0x698] sm:$0xff]
  %v229 = vmax.f32 %v17, 0.0
  %v230 = vmax.f32 %v18, 0.0
  %v231 = vmax.f32 %v19, 0.0
  %v232 = vmax.f32 %v20, 0.0
  %v233 = vmax.f32 %v21, 0.0
  %v234 = vmax.f32 %v22, 0.0
  %v235 = vmax.f32 %v23, 0.0
  %v236 = vmax.f32 %v24, 0.0
  %v237 = vmax.f32 %v25, 0.0
  %v238 = vmax.f32 %v26, 0.0
  %v239 = vmax.f32 %v27, 0.0
  %v240 = vmax.f32 %v28, 0.0
  %v241 = vmax.f32 %v29, 0.0
  %v242 = vmax.f32 %v30, 0.0
  %v243 = vmax.f32 %v31, 0.0
  %v244 = vmax.f32 %v32, 0.0
  %v245 = vmax.f32 %v33, 0.0
  %v246 = vmax.f32 %v34, 0.0
  %v247 = vmax.f32 %v35, 0.0
  %v248 = vmax.f32 %v36, 0.0
  %v249 = vmax.f32 %v37, 0.0
  %v250 = vmax.f32 %v38, 0.0
  %v251 = vmax.f32 %v39, 0.0
  %v252 = vmax.f32 %v40, 0.0
  %v253 = vmax.f32 %v41, 0.0
  %v254 = vmax.f32 %v42, 0.0
  %v255 = vmax.f32 %v43, 0.0
  %v256 = vmax.f32 %v44, 0.0
  %v257 = vmax.f32 %v45, 0.0
  %v258 = vmax.f32 %v46, 0.0
  %v259 = vmax.f32 %v47, 0.0
  %v260 = vmax.f32 %v48, 0.0
  %v261 = vmax.f32 %v49, 0.0
  %v262 = vmax.f32 %v50, 0.0
  %v263 = vmax.f32 %v51, 0.0
  %v264 = vmax.f32 %v52, 0.0
  %v265 = vmax.f32 %v53, 0.0
  %v266 = vmax.f32 %v54, 0.0
  %v267 = vmax.f32 %v55, 0.0
  %v268 = vmax.f32 %v56, 0.0
  %v269 = vmax.f32 %v57, 0.0
  %v270 = vmax.f32 %v58, 0.0
  %v271 = vmax.f32 %v59, 0.0
  %v272 = vmax.f32 %v60, 0.0
  %v273 = vmax.f32 %v61, 0.0
  %v274 = vmax.f32 %v62, 0.0
  %v275 = vmax.f32 %v63, 0.0
  %v276 = vmax.f32 %v64, 0.0
  %v277 = vmax.f32 %v65, 0.0
  %v278 = vmax.f32 %v66, 0.0
  %v279 = vmax.f32 %v67, 0.0
  %v280 = vmax.f32 %v68, 0.0
  %v281 = vmax.f32 %v69, 0.0
  %v282 = vmax.f32 %v70, 0.0
  %v283 = vmax.f32 %v71, 0.0
  %v284 = vmax.f32 %v72, 0.0
  %v285 = vmax.f32 %v73, 0.0
  %v286 = vmax.f32 %v74, 0.0
  %v287 = vmax.f32 %v75, 0.0
  %v288 = vmax.f32 %v76, 0.0
  %v289 = vmax.f32 %v77, 0.0
  %v290 = vmax.f32 %v78, 0.0
  %v291 = vmax.f32 %v79, 0.0
  %v292 = vmax.f32 %v80, 0.0
  %v293 = vmax.f32 %v81, 0.0
  %v294 = vmax.f32 %v82, 0.0
  %v295 = vmax.f32 %v83, 0.0
  %v296 = vmax.f32 %v84, 0.0
  %v297 = vmax.f32 %v85, 0.0
  %v298 = vmax.f32 %v86, 0.0
  %v299 = vmax.f32 %v87, 0.0
  %v300 = vmax.f32 %v88, 0.0
  %v301 = vmax.f32 %v89, 0.0
  %v302 = vmax.f32 %v90, 0.0
  %v303 = vmax.f32 %v91, 0.0
  %v304 = vmax.f32 %v92, 0.0
  %v305 = vmax.f32 %v93, 0.0
  %v306 = vmax.f32 %v94, 0.0
  %v307 = vmax.f32 %v95, 0.0
  %v308 = vmax.f32 %v96, 0.0
  %v309 = vmax.f32 %v97, 0.0
  %v310 = vmax.f32 %v98, 0.0
  %v311 = vmax.f32 %v99, 0.0
  %v312 = vmax.f32 %v100, 0.0
  %v313 = vmax.f32 %v101, 0.0
  %v314 = vmax.f32 %v102, 0.0
  %v315 = vmax.f32 %v103, 0.0
  %v316 = vmax.f32 %v104, 0.0
  %v317 = vmax.f32 %v105, 0.0
  %v318 = vmax.f32 %v106, 0.0
  %v319 = vmax.f32 %v107, 0.0
  %v320 = vmax.f32 %v108, 0.0
  %v321 = vmax.f32 %v109, 0.0
  %v322 = vmax.f32 %v110, 0.0
  %v323 = vmax.f32 %v111, 0.0
  %v324 = vmax.f32 %v112, 0.0
  %v325 = vmax.f32 %v113, 0.0
  %v326 = vmax.f32 %v114, 0.0
  %v327 = vmax.f32 %v115, 0.0
  %v328 = vmax.f32 %v116, 0.0
  %v329 = vmax.f32 %v117, 0.0
  %v330 = vmax.f32 %v118, 0.0
  %v331 = vmax.f32 %v119, 0.0
  %v332 = vmax.f32 %v120, 0.0
  %v333 = vmax.f32 %v121, 0.0
  %v334 = vmax.f32 %v122, 0.0
  %v335 = vmax.f32 %v123, 0.0
  %v336 = vmax.f32 %v124, 0.0
  %v337 = vmax.f32 %v125, 0.0
  %v338 = vmax.f32 %v126, 0.0
  %v339 = vmax.f32 %v127, 0.0
  %v340 = vmax.f32 %v128, 0.0
  %v341 = vmax.f32 %v129, 0.0
  %v342 = vmax.f32 %v130, 0.0
  %v343 = vmax.f32 %v131, 0.0
  %v344 = vmax.f32 %v132, 0.0
  %v345 = vmax.f32 %v133, 0.0
  %v346 = vmax.f32 %v134, 0.0
  %v347 = vmax.f32 %v135, 0.0
  %v348 = vmax.f32 %v136, 0.0
  %v349 = vmax.f32 %v137, 0.0
  %v350 = vmax.f32 %v138, 0.0
  %v351 = vmax.f32 %v139, 0.0
  %v352 = vmax.f32 %v140, 0.0
  %v353 = vmax.f32 %v141, 0.0
  %v354 = vmax.f32 %v142, 0.0
  %v355 = vmax.f32 %v143, 0.0
  %v356 = vmax.f32 %v144, 0.0
  %v357 = vmax.f32 %v145, 0.0
  %v358 = vmax.f32 %v146, 0.0
  %v359 = vmax.f32 %v147, 0.0
  %v360 = vmax.f32 %v148, 0.0
  %v361 = vmax.f32 %v149, 0.0
  %v362 = vmax.f32 %v150, 0.0
  %v363 = vmax.f32 %v151, 0.0
  %v364 = vmax.f32 %v152, 0.0
  %v365 = vmax.f32 %v153, 0.0
  %v366 = vmax.f32 %v154, 0.0
  %v367 = vmax.f32 %v155, 0.0
  %v368 = vmax.f32 %v156, 0.0
  %v369 = vmax.f32 %v157, 0.0
  %v370 = vmax.f32 %v158, 0.0
  %v371 = vmax.f32 %v159, 0.0
  %v372 = vmax.f32 %v160, 0.0
  %v373 = vmax.f32 %v161, 0.0
  %v374 = vmax.f32 %v162, 0.0
  %v375 = vmax.f32 %v163, 0.0
  %v376 = vmax.f32 %v164, 0.0
  %v377 = vmax.f32 %v165, 0.0
  %v378 = vmax.f32 %v166, 0.0
  %v379 = vmax.f32 %v167, 0.0
  %v380 = vmax.f32 %v168, 0.0
  %v381 = vmax.f32 %v169, 0.0
  %v382 = vmax.f32 %v170, 0.0
  %v383 = vmax.f32 %v171, 0.0
  %v384 = vmax.f32 %v172, 0.0
  %v385 = vmax.f32 %v173, 0.0
  %v386 = vmax.f32 %v174, 0.0
  %v387 = vmax.f32 %v175, 0.0
  %v388 = vmax.f32 %v176, 0.0
  %v389 = vmax.f32 %v177, 0.0
  %v390 = vmax.f32 %v178, 0.0
  %v391 = vmax.f32 %v179, 0.0
  %v392 = vmax.f32 %v180, 0.0
  %v393 = vmax.f32 %v181, 0.0
  %v394 = vmax.f32 %v182, 0.0
  %v395 = vmax.f32 %v183, 0.0
  %v396 = vmax.f32 %v184, 0.0
  %v397 = vmax.f32 %v185, 0.0
  %v398 = vmax.f32 %v186, 0.0
  %v399 = vmax.f32 %v187, 0.0
  %v400 = vmax.f32 %v188, 0.0
  %v401 = vmax.f32 %v189, 0.0
  %v402 = vmax.f32 %v190, 0.0
  %v403 = vmax.f32 %v191, 0.0
  %v404 = vmax.f32 %v192, 0.0
  %v405 = vmax.f32 %v193, 0.0
  %v406 = vmax.f32 %v194, 0.0
  %v407 = vmax.f32 %v195, 0.0
  %v408 = vmax.f32 %v196, 0.0
  %v409 = vmax.f32 %v197, 0.0
  %v410 = vmax.f32 %v198, 0.0
  %v411 = vmax.f32 %v199, 0.0
  %v412 = vmax.f32 %v200, 0.0
  %v413 = vmax.f32 %v201, 0.0
  %v414 = vmax.f32 %v202, 0.0
  %v415 = vmax.f32 %v203, 0.0
  %v416 = vmax.f32 %v204, 0.0
  %v417 = vmax.f32 %v205, 0.0
  %v418 = vmax.f32 %v206, 0.0
  %v419 = vmax.f32 %v207, 0.0
  %v420 = vmax.f32 %v208, 0.0
  %v421 = vmax.f32 %v209, 0.0
  %v422 = vmax.f32 %v210, 0.0
  %v423 = vmax.f32 %v211, 0.0
  %v424 = vmax.f32 %v212, 0.0
  %v425 = vmax.f32 %v213, 0.0
  %v426 = vmax.f32 %v214, 0.0
  %v427 = vmax.f32 %v215, 0.0
  %v428 = vmax.f32 %v216, 0.0
  %v429 = vmax.f32 %v217, 0.0
  %v430 = vmax.f32 %v218, 0.0
  %v431 = vmax.f32 %v219, 0.0
  %v432 = vmax.f32 %v220, 0.0
  %v433 = vmax.f32 %v221, 0.0
  %v434 = vmax.f32 %v222, 0.0
  %v435 = vmax.f32 %v223, 0.0
  %v436 = vmax.f32 %v224, 0.0
  %v437 = vmax.f32 %v225, 0.0
  %v438 = vmax.f32 %v226, 0.0
  %v439 = vmax.f32 %v227, 0.0
  %v440 = vmax.f32 %v228, 0.0
  %v441 = vld [vmem:[%s1] sm:$0xff]
  %v442 = vld [vmem:[%s1 + $0x8] sm:$0xff]
  %v443 = vld [vmem:[%s1 + $0x10] sm:$0xff]
  %v444 = vld [vmem:[%s1 + $0x18] sm:$0xff]
  %v445 = vld [vmem:[%s1 + $0x20] sm:$0xff]
  %v446 = vld [vmem:[%s1 + $0x28] sm:$0xff]
  %v447 = vld [vmem:[%s1 + $0x30] sm:$0xff]
  %v448 = vld [vmem:[%s1 + $0x38] sm:$0xff]
  %v449 = vld [vmem:[%s1 + $0x40] sm:$0xff]
  %v450 = vld [vmem:[%s1 + $0x48] sm:$0xff]
  %v451 = vld [vmem:[%s1 + $0x50] sm:$0xff]
  %v452 = vld [vmem:[%s1 + $0x58] sm:$0xff]
  %v453 = vld [vmem:[%s1 + $0x60] sm:$0xff]
  %v454 = vld [vmem:[%s1 + $0x68] sm:$0xff]
  %v455 = vld [vmem:[%s1 + $0x70] sm:$0xff]
  %v456 = vld [vmem:[%s1 + $0x78] sm:$0xff]
  %v457 = vld [vmem:[%s1 + $0x80] sm:$0xff]
  %v458 = vld [vmem:[%s1 + $0x88] sm:$0xff]
  %v459 = vld [vmem:[%s1 + $0x90] sm:$0xff]
  %v460 = vld [vmem:[%s1 + $0x98] sm:$0xff]
  %v461 = vld [vmem:[%s1 + $0xa0] sm:$0xff]
  %v462 = vld [vmem:[%s1 + $0xa8] sm:$0xff]
  %v463 = vld [vmem:[%s1 + $0xb0] sm:$0xff]
  %v464 = vld [vmem:[%s1 + $0xb8] sm:$0xff]
  %v465 = vld [vmem:[%s1 + $0xc0] sm:$0xff]
  %v466 = vld [vmem:[%s1 + $0xc8] sm:$0xff]
  %v467 = vld [vmem:[%s1 + $0xd0] sm:$0xff]
  %v468 = vld [vmem:[%s1 + $0xd8] sm:$0xff]
  %v469 = vld [vmem:[%s1 + $0xe0] sm:$0xff]
  %v470 = vld [vmem:[%s1 + $0xe8] sm:$0xff]
  %v471 = vld [vmem:[%s1 + $0xf0] sm:$0xff]
  %v472 = vld [vmem:[%s1 + $0xf8] sm:$0xff]
  %v473 = vld [vmem:[%s1 + $0x100] sm:$0xff]
  %v474 = vld [vmem:[%s1 + $0x108] sm:$0xff]
  %v475 = vld [vmem:[%s1 + $0x110] sm:$0xff]
  %v476 = vld [vmem:[%s1 + $0x118] sm:$0xff]
  %v477 = vld [vmem:[%s1 + $0x120] sm:$0xff]
  %v478 = vld [vmem:[%s1 + $0x128] sm:$0xff]
  %v479 = vld [vmem:[%s1 + $0x130] sm:$0xff]
  %v480 = vld [vmem:[%s1 + $0x138] sm:$0xff]
  %v481 = vld [vmem:[%s1 + $0x140] sm:$0xff]
  %v482 = vld [vmem:[%s1 + $0x148] sm:$0xff]
  %v483 = vld [vmem:[%s1 + $0x150] sm:$0xff]
  %v484 = vld [vmem:[%s1 + $0x158] sm:$0xff]
  %v485 = vld [vmem:[%s1 + $0x160] sm:$0xff]
  %v486 = vld [vmem:[%s1 + $0x168] sm:$0xff]
  %v487 = vld [vmem:[%s1 + $0x170] sm:$0xff]
  %v488 = vld [vmem:[%s1 + $0x178] sm:$0xff]
  %v489 = vld [vmem:[%s1 + $0x180] sm:$0xff]
  %v490 = vld [vmem:[%s1 + $0x188] sm:$0xff]
  %v491 = vld [vmem:[%s1 + $0x190] sm:$0xff]
  %v492 = vld [vmem:[%s1 + $0x198] sm:$0xff]
  %v493 = vld [vmem:[%s1 + $0x1a0] sm:$0xff]
  %v494 = vld [vmem:[%s1 + $0x1a8] sm:$0xff]
  %v495 = vld [vmem:[%s1 + $0x1b0] sm:$0xff]
  %v496 = vld [vmem:[%s1 + $0x1b8] sm:$0xff]
  %v497 = vld [vmem:[%s1 + $0x1c0] sm:$0xff]
  %v498 = vld [vmem:[%s1 + $0x1c8] sm:$0xff]
  %v499 = vld [vmem:[%s1 + $0x1d0] sm:$0xff]
  %v500 = vld [vmem:[%s1 + $0x1d8] sm:$0xff]
  %v501 = vld [vmem:[%s1 + $0x1e0] sm:$0xff]
  %v502 = vld [vmem:[%s1 + $0x1e8] sm:$0xff]
  %v503 = vld [vmem:[%s1 + $0x1f0] sm:$0xff]
  %v504 = vld [vmem:[%s1 + $0x1f8] sm:$0xff]
  %v505 = vld [vmem:[%s1 + $0x200] sm:$0xff]
  %v506 = vld [vmem:[%s1 + $0x208] sm:$0xff]
  %v507 = vld [vmem:[%s1 + $0x210] sm:$0xff]
  %v508 = vld [vmem:[%s1 + $0x218] sm:$0xff]
  %v509 = vld [vmem:[%s1 + $0x220] sm:$0xff]
  %v510 = vld [vmem:[%s1 + $0x228] sm:$0xff]
  %v511 = vld [vmem:[%s1 + $0x230] sm:$0xff]
  %v512 = vld [vmem:[%s1 + $0x238] sm:$0xff]
  %v513 = vld [vmem:[%s1 + $0x240] sm:$0xff]
  %v514 = vld [vmem:[%s1 + $0x248] sm:$0xff]
  %v515 = vld [vmem:[%s1 + $0x250] sm:$0xff]
  %v516 = vld [vmem:[%s1 + $0x258] sm:$0xff]
  %v517 = vld [vmem:[%s1 + $0x260] sm:$0xff]
  %v518 = vld [vmem:[%s1 + $0x268] sm:$0xff]
  %v519 = vld [vmem:[%s1 + $0x270] sm:$0xff]
  %v520 = vld [vmem:[%s1 + $0x278] sm:$0xff]
  %v521 = vld [vmem:[%s1 + $0x280] sm:$0xff]
  %v522 = vld [vmem:[%s1 + $0x288] sm:$0xff]
  %v523 = vld [vmem:[%s1 + $0x290] sm:$0xff]
  %v524 = vld [vmem:[%s1 + $0x298] sm:$0xff]
  %v525 = vld [vmem:[%s1 + $0x2a0] sm:$0xff]
  %v526 = vld [vmem:[%s1 + $0x2a8] sm:$0xff]
  %v527 = vld [vmem:[%s1 + $0x2b0] sm:$0xff]
  %v528 = vld [vmem:[%s1 + $0x2b8] sm:$0xff]
  %v529 = vld [vmem:[%s1 + $0x2c0] sm:$0xff]
  %v530 = vld [vmem:[%s1 + $0x2c8] sm:$0xff]
  %v531 = vld [vmem:[%s1 + $0x2d0] sm:$0xff]
  %v532 = vld [vmem:[%s1 + $0x2d8] sm:$0xff]
  %v533 = vld [vmem:[%s1 + $0x2e0] sm:$0xff]
  %v534 = vld [vmem:[%s1 + $0x2e8] sm:$0xff]
  %v535 = vld [vmem:[%s1 + $0x2f0] sm:$0xff]
  %v536 = vld [vmem:[%s1 + $0x2f8] sm:$0xff]
  %v537 = vld [vmem:[%s1 + $0x300] sm:$0xff]
  %v538 = vld [vmem:[%s1 + $0x308] sm:$0xff]
  %v539 = vld [vmem:[%s1 + $0x310] sm:$0xff]
  %v540 = vld [vmem:[%s1 + $0x318] sm:$0xff]
  %v541 = vld [vmem:[%s1 + $0x320] sm:$0xff]
  %v542 = vld [vmem:[%s1 + $0x328] sm:$0xff]
  %v543 = vld [vmem:[%s1 + $0x330] sm:$0xff]
  %v544 = vld [vmem:[%s1 + $0x338] sm:$0xff]
  %v545 = vld [vmem:[%s1 + $0x340] sm:$0xff]
  %v546 = vld [vmem:[%s1 + $0x348] sm:$0xff]
  %v547 = vld [vmem:[%s1 + $0x350] sm:$0xff]
  %v548 = vld [vmem:[%s1 + $0x358] sm:$0xff]
  %v549 = vld [vmem:[%s1 + $0x360] sm:$0xff]
  %v550 = vld [vmem:[%s1 + $0x368] sm:$0xff]
  %v551 = vld [vmem:[%s1 + $0x370] sm:$0xff]
  %v552 = vld [vmem:[%s1 + $0x378] sm:$0xff]
  %v553 = vld [vmem:[%s1 + $0x380] sm:$0xff]
  %v554 = vld [vmem:[%s1 + $0x388] sm:$0xff]
  %v555 = vld [vmem:[%s1 + $0x390] sm:$0xff]
  %v556 = vld [vmem:[%s1 + $0x398] sm:$0xff]
  %v557 = vld [vmem:[%s1 + $0x3a0] sm:$0xff]
  %v558 = vld [vmem:[%s1 + $0x3a8] sm:$0xff]
  %v559 = vld [vmem:[%s1 + $0x3b0] sm:$0xff]
  %v560 = vld [vmem:[%s1 + $0x3b8] sm:$0xff]
  %v561 = vld [vmem:[%s1 + $0x3c0] sm:$0xff]
  %v562 = vld [vmem:[%s1 + $0x3c8] sm:$0xff]
  %v563 = vld [vmem:[%s1 + $0x3d0] sm:$0xff]
  %v564 = vld [vmem:[%s1 + $0x3d8] sm:$0xff]
  %v565 = vld [vmem:[%s1 + $0x3e0] sm:$0xff]
  %v566 = vld [vmem:[%s1 + $0x3e8] sm:$0xff]
  %v567 = vld [vmem:[%s1 + $0x3f0] sm:$0xff]
  %v568 = vld [vmem:[%s1 + $0x3f8] sm:$0xff]
  %v569 = vld [vmem:[%s1 + $0x400] sm:$0xff]
  %v570 = vld [vmem:[%s1 + $0x408] sm:$0xff]
  %v571 = vld [vmem:[%s1 + $0x410] sm:$0xff]
  %v572 = vld [vmem:[%s1 + $0x418] sm:$0xff]
  %v573 = vld [vmem:[%s1 + $0x420] sm:$0xff]
  %v574 = vld [vmem:[%s1 + $0x428] sm:$0xff]
  %v575 = vld [vmem:[%s1 + $0x430] sm:$0xff]
  %v576 = vld [vmem:[%s1 + $0x438] sm:$0xff]
  %v577 = vld [vmem:[%s1 + $0x440] sm:$0xff]
  %v578 = vld [vmem:[%s1 + $0x448] sm:$0xff]
  %v579 = vld [vmem:[%s1 + $0x450] sm:$0xff]
  %v580 = vld [vmem:[%s1 + $0x458] sm:$0xff]
  %v581 = vld [vmem:[%s1 + $0x460] sm:$0xff]
  %v582 = vld [vmem:[%s1 + $0x468] sm:$0xff]
  %v583 = vld [vmem:[%s1 + $0x470] sm:$0xff]
  %v584 = vld [vmem:[%s1 + $0x478] sm:$0xff]
  %v585 = vld [vmem:[%s1 + $0x480] sm:$0xff]
  %v586 = vld [vmem:[%s1 + $0x488] sm:$0xff]
  %v587 = vld [vmem:[%s1 + $0x490] sm:$0xff]
  %v588 = vld [vmem:[%s1 + $0x498] sm:$0xff]
  %v589 = vld [vmem:[%s1 + $0x4a0] sm:$0xff]
  %v590 = vld [vmem:[%s1 + $0x4a8] sm:$0xff]
  %v591 = vld [vmem:[%s1 + $0x4b0] sm:$0xff]
  %v592 = vld [vmem:[%s1 + $0x4b8] sm:$0xff]
  %v593 = vld [vmem:[%s1 + $0x4c0] sm:$0xff]
  %v594 = vld [vmem:[%s1 + $0x4c8] sm:$0xff]
  %v595 = vld [vmem:[%s1 + $0x4d0] sm:$0xff]
  %v596 = vld [vmem:[%s1 + $0x4d8] sm:$0xff]
  %v597 = vld [vmem:[%s1 + $0x4e0] sm:$0xff]
  %v598 = vld [vmem:[%s1 + $0x4e8] sm:$0xff]
  %v599 = vld [vmem:[%s1 + $0x4f0] sm:$0xff]
  %v600 = vld [vmem:[%s1 + $0x4f8] sm:$0xff]
  %v601 = vld [vmem:[%s1 + $0x500] sm:$0xff]
  %v602 = vld [vmem:[%s1 + $0x508] sm:$0xff]
  %v603 = vld [vmem:[%s1 + $0x510] sm:$0xff]
  %v604 = vld [vmem:[%s1 + $0x518] sm:$0xff]
  %v605 = vld [vmem:[%s1 + $0x520] sm:$0xff]
  %v606 = vld [vmem:[%s1 + $0x528] sm:$0xff]
  %v607 = vld [vmem:[%s1 + $0x530] sm:$0xff]
  %v608 = vld [vmem:[%s1 + $0x538] sm:$0xff]
  %v609 = vld [vmem:[%s1 + $0x540] sm:$0xff]
  %v610 = vld [vmem:[%s1 + $0x548] sm:$0xff]
  %v611 = vld [vmem:[%s1 + $0x550] sm:$0xff]
  %v612 = vld [vmem:[%s1 + $0x558] sm:$0xff]
  %v613 = vld [vmem:[%s1 + $0x560] sm:$0xff]
  %v614 = vld [vmem:[%s1 + $0x568] sm:$0xff]
  %v615 = vld [vmem:[%s1 + $0x570] sm:$0xff]
  %v616 = vld [vmem:[%s1 + $0x578] sm:$0xff]
  %v617 = vld [vmem:[%s1 + $0x580] sm:$0xff]
  %v618 = vld [vmem:[%s1 + $0x588] sm:$0xff]
  %v619 = vld [vmem:[%s1 + $0x590] sm:$0xff]
  %v620 = vld [vmem:[%s1 + $0x598] sm:$0xff]
  %v621 = vld [vmem:[%s1 + $0x5a0] sm:$0xff]
  %v622 = vld [vmem:[%s1 + $0x5a8] sm:$0xff]
  %v623 = vld [vmem:[%s1 + $0x5b0] sm:$0xff]
  %v624 = vld [vmem:[%s1 + $0x5b8] sm:$0xff]
  %v625 = vld [vmem:[%s1 + $0x5c0] sm:$0xff]
  %v626 = vld [vmem:[%s1 + $0x5c8] sm:$0xff]
  %v627 = vld [vmem:[%s1 + $0x5d0] sm:$0xff]
  %v628 = vld [vmem:[%s1 + $0x5d8] sm:$0xff]
  %v629 = vld [vmem:[%s1 + $0x5e0] sm:$0xff]
  %v630 = vld [vmem:[%s1 + $0x5e8] sm:$0xff]
  %v631 = vld [vmem:[%s1 + $0x5f0] sm:$0xff]
  %v632 = vld [vmem:[%s1 + $0x5f8] sm:$0xff]
  %v633 = vld [vmem:[%s1 + $0x600] sm:$0xff]
  %v634 = vld [vmem:[%s1 + $0x608] sm:$0xff]
  %v635 = vld [vmem:[%s1 + $0x610] sm:$0xff]
  %v636 = vld [vmem:[%s1 + $0x618] sm:$0xff]
  %v637 = vld [vmem:[%s1 + $0x620] sm:$0xff]
  %v638 = vld [vmem:[%s1 + $0x628] sm:$0xff]
  %v639 = vld [vmem:[%s1 + $0x630] sm:$0xff]
  %v640 = vld [vmem:[%s1 + $0x638] sm:$0xff]
  %v641 = vld [vmem:[%s1 + $0x640] sm:$0xff]
  %v642 = vld [vmem:[%s1 + $0x648] sm:$0xff]
  %v643 = vld [vmem:[%s1 + $0x650] sm:$0xff]
  %v644 = vld [vmem:[%s1 + $0x658] sm:$0xff]
  %v645 = vld [vmem:[%s1 + $0x660] sm:$0xff]
  %v646 = vld [vmem:[%s1 + $0x668] sm:$0xff]
  %v647 = vld [vmem:[%s1 + $0x670] sm:$0xff]
  %v648 = vld [vmem:[%s1 + $0x678] sm:$0xff]
  %v649 = vld [vmem:[%s1 + $0x680] sm:$0xff]
  %v650 = vld [vmem:[%s1 + $0x688] sm:$0xff]
  %v651 = vld [vmem:[%s1 + $0x690] sm:$0xff]
  %v652 = vld [vmem:[%s1 + $0x698] sm:$0xff]
  %v653 = vld [vmem:[%s1 + $0x6a0] sm:$0xff]
  %v654 = vld [vmem:[%s1 + $0x6a8] sm:$0xff]
  %v655 = vld [vmem:[%s1 + $0x6b0] sm:$0xff]
  %v656 = vld [vmem:[%s1 + $0x6b8] sm:$0xff]
  %v657 = vld [vmem:[%s1 + $0x6c0] sm:$0xff]
  %v658 = vld [vmem:[%s1 + $0x6c8] sm:$0xff]
  %v659 = vld [vmem:[%s1 + $0x6d0] sm:$0xff]
  %v660 = vld [vmem:[%s1 + $0x6d8] sm:$0xff]
  %v661 = vld [vmem:[%s1 + $0x6e0] sm:$0xff]
  %v662 = vld [vmem:[%s1 + $0x6e8] sm:$0xff]
  %v663 = vld [vmem:[%s1 + $0x6f0] sm:$0xff]
  %v664 = vld [vmem:[%s1 + $0x6f8] sm:$0xff]
  %vm665 = vcmask 261120
  %v667 = vsel %vm665, %v454, 0
  %v670 = vsel %vm665, %v468, 0
  %v673 = vsel %vm665, %v482, 0
  %v676 = vsel %vm665, %v496, 0
  %v679 = vsel %vm665, %v510, 0
  %v682 = vsel %vm665, %v524, 0
  %v685 = vsel %vm665, %v538, 0
  %v688 = vsel %vm665, %v552, 0
  %v691 = vsel %vm665, %v566, 0
  %v694 = vsel %vm665, %v580, 0
  %v697 = vsel %vm665, %v594, 0
  %v700 = vsel %vm665, %v608, 0
  %v703 = vsel %vm665, %v622, 0
  %v706 = vsel %vm665, %v636, 0
  %v709 = vsel %vm665, %v650, 0
  %v712 = vsel %vm665, %v664, 0
  %714 = vmatprep.subr.mxu0 0.0
  %715 = vmatpush1.msra.mxu0 %v229
  %716 = vmatprep.subr.mxu0 0.0
  %717 = vmatpush1.msra.mxu0 %v230
  %718 = vmatprep.subr.mxu0 0.0
  %719 = vmatpush1.msra.mxu0 %v231
  %720 = vmatprep.subr.mxu0 0.0
  %721 = vmatpush1.msra.mxu0 %v232
  %722 = vmatprep.subr.mxu0 0.0
  %723 = vmatpush1.msra.mxu0 %v233
  %724 = vmatprep.subr.mxu0 0.0
  %725 = vmatpush1.msra.mxu0 %v234
  %726 = vmatprep.subr.mxu0 0.0
  %727 = vmatpush1.msra.mxu0 %v235
  %728 = vmatprep.subr.mxu0 0.0
  %729 = vmatpush1.msra.mxu0 %v236
  %730 = vmatprep.subr.mxu0 0.0
  %731 = vmatpush1.msra.mxu0 %v237
  %732 = vmatprep.subr.mxu0 0.0
  %733 = vmatpush1.msra.mxu0 %v238
  %734 = vmatprep.subr.mxu0 0.0
  %735 = vmatpush1.msra.mxu0 %v239
  %736 = vmatprep.subr.mxu0 0.0
  %737 = vmatpush1.msra.mxu0 %v240
  %738 = vmatprep.subr.mxu0 0.0
  %739 = vmatpush1.msra.mxu0 %v241
  %740 = vmatprep.subr.mxu0 0.0
  %741 = vmatpush1.msra.mxu0 %v242
  %742 = vmatprep.subr.mxu0 0.0
  %743 = vmatpush1.msra.mxu0 %v243
  %744 = vmatprep.subr.mxu0 0.0
  %745 = vmatpush1.msra.mxu0 %v244
  %746 = vmatprep.subr.mxu0 0.0
  %747 = vmatpush1.msra.mxu0 %v245
  %748 = vmatprep.subr.mxu0 0.0
  %749 = vmatpush1.msra.mxu0 %v246
  %750 = vmatprep.subr.mxu0 0.0
  %751 = vmatpush1.msra.mxu0 %v247
  %752 = vmatprep.subr.mxu0 0.0
  %753 = vmatpush1.msra.mxu0 %v248
  %754 = vmatprep.subr.mxu0 0.0
  %755 = vmatpush1.msra.mxu0 %v249
  %756 = vmatprep.subr.mxu0 0.0
  %757 = vmatpush1.msra.mxu0 %v250
  %758 = vmatprep.subr.mxu0 0.0
  %759 = vmatpush1.msra.mxu0 %v251
  %760 = vmatprep.subr.mxu0 0.0
  %761 = vmatpush1.msra.mxu0 %v252
  %762 = vmatprep.subr.mxu0 0.0
  %763 = vmatpush1.msra.mxu0 %v253
  %764 = vmatprep.subr.mxu0 0.0
  %765 = vmatpush1.msra.mxu0 %v254
  %766 = vmatprep.subr.mxu0 0.0
  %767 = vmatpush1.msra.mxu0 %v255
  %768 = vmatprep.subr.mxu0 0.0
  %769 = vmatpush1.msra.mxu0 %v256
  %770 = vmatprep.subr.mxu0 0.0
  %771 = vmatpush1.msra.mxu0 %v257
  %772 = vmatprep.subr.mxu0 0.0
  %773 = vmatpush1.msra.mxu0 %v258
  %774 = vmatprep.subr.mxu0 0.0
  %775 = vmatpush1.msra.mxu0 %v259
  %776 = vmatprep.subr.mxu0 0.0
  %777 = vmatpush1.msra.mxu0 %v260
  %778 = vmatprep.mubr.f32.mxu0 %v442
  %779 = vmatmul.mubr.f32.gmra.mrb[0].mxu0 %v441
  %v780 = vpop.f32.mrb[0].mxu0
  %v781 = vadd.f32 0.0, %v780
  %v782 = vpop.f32.mrb[0].mxu0
  %783 = vmatprep.mubr.f32.mxu0 %v456
  %784 = vmatmul.mubr.f32.gmra.mrb[0].mxu0 %v455
  %v785 = vpop.f32.mrb[0].mxu0
  %v786 = vadd.f32 0.0, %v785
  %v787 = vpop.f32.mrb[0].mxu0
  %788 = vmatprep.mubr.f32.mxu0 %v470
  %789 = vmatmul.mubr.f32.gmra.mrb[0].mxu0 %v469
  %v790 = vpop.f32.mrb[0].mxu0
  %v791 = vadd.f32 0.0, %v790
  %v792 = vpop.f32.mrb[0].mxu0
  %793 = vmatprep.mubr.f32.mxu0 %v484
  %794 = vmatmul.mubr.f32.gmra.mrb[0].mxu0 %v483
  %v795 = vpop.f32.mrb[0].mxu0
  %v796 = vadd.f32 0.0, %v795
  %v797 = vpop.f32.mrb[0].mxu0
  %798 = vmatprep.mubr.f32.mxu0 %v498
  %799 = vmatmul.mubr.f32.gmra.mrb[0].mxu0 %v497
  %v800 = vpop.f32.mrb[0].mxu0
  %v801 = vadd.f32 0.0, %v800
  %v802 = vpop.f32.mrb[0].mxu0
  %803 = vmatprep.mubr.f32.mxu0 %v512
  %804 = vmatmul.mubr.f32.gmra.mrb[0].mxu0 %v511
  %v805 = vpop.f32.mrb[0].mxu0
  %v806 = vadd.f32 0.0, %v805
  %v807 = vpop.f32.mrb[0].mxu0
  %808 = vmatprep.mubr.f32.mxu0 %v526
  %809 = vmatmul.mubr.f32.gmra.mrb[0].mxu0 %v525
  %v810 = vpop.f32.mrb[0].mxu0
  %v811 = vadd.f32 0.0, %v810
  %v812 = vpop.f32.mrb[0].mxu0
  %813 = vmatprep.mubr.f32.mxu0 %v540
  %814 = vmatmul.mubr.f32.gmra.mrb[0].mxu0 %v539
  %v815 = vpop.f32.mrb[0].mxu0
  %v816 = vadd.f32 0.0, %v815
  %v817 = vpop.f32.mrb[0].mxu0
  %818 = vmatprep.mubr.f32.mxu0 %v554
  %819 = vmatmul.mubr.f32.gmra.mrb[0].mxu0 %v553
  %v820 = vpop.f32.mrb[0].mxu0
  %v821 = vadd.f32 0.0, %v820
  %v822 = vpop.f32.mrb[0].mxu0
  %823 = vmatprep.mubr.f32.mxu0 %v568
  %824 = vmatmul.mubr.f32.gmra.mrb[0].mxu0 %v567
  %v825 = vpop.f32.mrb[0].mxu0
  %v826 = vadd.f32 0.0, %v825
  %v827 = vpop.f32.mrb[0].mxu0
  %828 = vmatprep.mubr.f32.mxu0 %v582
  %829 = vmatmul.mubr.f32.gmra.mrb[0].mxu0 %v581
  %v830 = vpop.f32.mrb[0].mxu0
  %v831 = vadd.f32 0.0, %v830
  %v832 = vpop.f32.mrb[0].mxu0
  %833 = vmatprep.mubr.f32.mxu0 %v596
  %834 = vmatmul.mubr.f32.gmra.mrb[0].mxu0 %v595
  %v835 = vpop.f32.mrb[0].mxu0
  %v836 = vadd.f32 0.0, %v835
  %v837 = vpop.f32.mrb[0].mxu0
  %838 = vmatprep.mubr.f32.mxu0 %v610
  %839 = vmatmul.mubr.f32.gmra.mrb[0].mxu0 %v609
  %v840 = vpop.f32.mrb[0].mxu0
  %v841 = vadd.f32 0.0, %v840
  %v842 = vpop.f32.mrb[0].mxu0
  %843 = vmatprep.mubr.f32.mxu0 %v624
  %844 = vmatmul.mubr.f32.gmra.mrb[0].mxu0 %v623
  %v845 = vpop.f32.mrb[0].mxu0
  %v846 = vadd.f32 0.0, %v845
  %v847 = vpop.f32.mrb[0].mxu0
  %848 = vmatprep.mubr.f32.mxu0 %v638
  %849 = vmatmul.mubr.f32.gmra.mrb[0].mxu0 %v637
  %v850 = vpop.f32.mrb[0].mxu0
  %v851 = vadd.f32 0.0, %v850
  %v852 = vpop.f32.mrb[0].mxu0
  %853 = vmatprep.mubr.f32.mxu0 %v652
  %854 = vmatmul.mubr.f32.gmra.mrb[0].mxu0 %v651
  %v855 = vpop.f32.mrb[0].mxu0
  %v856 = vadd.f32 0.0, %v855
  %v857 = vpop.f32.mrb[0].mxu0
  %858 = vdwg.mxu0
  %859 = vmatprep.subr.mxu0 0.0
  %860 = vmatpush1.msra.mxu0 %v261
  %861 = vmatprep.subr.mxu0 0.0
  %862 = vmatpush1.msra.mxu0 %v262
  %863 = vmatprep.subr.mxu0 0.0
  %864 = vmatpush1.msra.mxu0 %v263
  %865 = vmatprep.subr.mxu0 0.0
  %866 = vmatpush1.msra.mxu0 %v264
  %867 = vmatprep.subr.mxu0 0.0
  %868 = vmatpush1.msra.mxu0 %v265
  %869 = vmatprep.subr.mxu0 0.0
  %870 = vmatpush1.msra.mxu0 %v266
  %871 = vmatprep.subr.mxu0 0.0
  %872 = vmatpush1.msra.mxu0 %v267
  %873 = vmatprep.subr.mxu0 0.0
  %874 = vmatpush1.msra.mxu0 %v268
  %875 = vmatprep.subr.mxu0 0.0
  %876 = vmatpush1.msra.mxu0 %v269
  %877 = vmatprep.subr.mxu0 0.0
  %878 = vmatpush1.msra.mxu0 %v270
  %879 = vmatprep.subr.mxu0 0.0
  %880 = vmatpush1.msra.mxu0 %v271
  %881 = vmatprep.subr.mxu0 0.0
  %882 = vmatpush1.msra.mxu0 %v272
  %883 = vmatprep.subr.mxu0 0.0
  %884 = vmatpush1.msra.mxu0 %v273
  %885 = vmatprep.subr.mxu0 0.0
  %886 = vmatpush1.msra.mxu0 %v274
  %887 = vmatprep.subr.mxu0 0.0
  %888 = vmatpush1.msra.mxu0 %v275
  %889 = vmatprep.subr.mxu0 0.0
  %890 = vmatpush1.msra.mxu0 %v276
  %891 = vmatprep.subr.mxu0 0.0
  %892 = vmatpush1.msra.mxu0 %v277
  %893 = vmatprep.subr.mxu0 0.0
  %894 = vmatpush1.msra.mxu0 %v278
  %895 = vmatprep.subr.mxu0 0.0
  %896 = vmatpush1.msra.mxu0 %v279
  %897 = vmatprep.subr.mxu0 0.0
  %898 = vmatpush1.msra.mxu0 %v280
  %899 = vmatprep.subr.mxu0 0.0
  %900 = vmatpush1.msra.mxu0 %v281
  %901 = vmatprep.subr.mxu0 0.0
  %902 = vmatpush1.msra.mxu0 %v282
  %903 = vmatprep.subr.mxu0 0.0
  %904 = vmatpush1.msra.mxu0 %v283
  %905 = vmatprep.subr.mxu0 0.0
  %906 = vmatpush1.msra.mxu0 %v284
  %907 = vmatprep.subr.mxu0 0.0
  %908 = vmatpush1.msra.mxu0 %v285
  %909 = vmatprep.subr.mxu0 0.0
  %910 = vmatpush1.msra.mxu0 %v286
  %911 = vmatprep.subr.mxu0 0.0
  %912 = vmatpush1.msra.mxu0 %v287
  %913 = vmatprep.subr.mxu0 0.0
  %914 = vmatpush1.msra.mxu0 %v288
  %915 = vmatprep.subr.mxu0 0.0
  %916 = vmatpush1.msra.mxu0 %v289
  %917 = vmatprep.subr.mxu0 0.0
  %918 = vmatpush1.msra.mxu0 %v290
  %919 = vmatprep.subr.mxu0 0.0
  %920 = vmatpush1.msra.mxu0 %v291
  %921 = vmatprep.subr.mxu0 0.0
  %922 = vmatpush1.msra.mxu0 %v292
  %923 = vmatprep.mubr.f32.mxu0 %v444
  %924 = vmatmul.mubr.f32.gmra.mrb[0].mxu0 %v443
  %v925 = vpop.f32.mrb[0].mxu0
  %v926 = vadd.f32 %v781, %v925
  %v927 = vpop.f32.mrb[0].mxu0
  %928 = vmatprep.mubr.f32.mxu0 %v458
  %929 = vmatmul.mubr.f32.gmra.mrb[0].mxu0 %v457
  %v930 = vpop.f32.mrb[0].mxu0
  %v931 = vadd.f32 %v786, %v930
  %v932 = vpop.f32.mrb[0].mxu0
  %933 = vmatprep.mubr.f32.mxu0 %v472
  %934 = vmatmul.mubr.f32.gmra.mrb[0].mxu0 %v471
  %v935 = vpop.f32.mrb[0].mxu0
  %v936 = vadd.f32 %v791, %v935
  %v937 = vpop.f32.mrb[0].mxu0
  %938 = vmatprep.mubr.f32.mxu0 %v486
  %939 = vmatmul.mubr.f32.gmra.mrb[0].mxu0 %v485
  %v940 = vpop.f32.mrb[0].mxu0
  %v941 = vadd.f32 %v796, %v940
  %v942 = vpop.f32.mrb[0].mxu0
  %943 = vmatprep.mubr.f32.mxu0 %v500
  %944 = vmatmul.mubr.f32.gmra.mrb[0].mxu0 %v499
  %v945 = vpop.f32.mrb[0].mxu0
  %v946 = vadd.f32 %v801, %v945
  %v947 = vpop.f32.mrb[0].mxu0
  %948 = vmatprep.mubr.f32.mxu0 %v514
  %949 = vmatmul.mubr.f32.gmra.mrb[0].mxu0 %v513
  %v950 = vpop.f32.mrb[0].mxu0
  %v951 = vadd.f32 %v806, %v950
  %v952 = vpop.f32.mrb[0].mxu0
  %953 = vmatprep.mubr.f32.mxu0 %v528
  %954 = vmatmul.mubr.f32.gmra.mrb[0].mxu0 %v527
  %v955 = vpop.f32.mrb[0].mxu0
  %v956 = vadd.f32 %v811, %v955
  %v957 = vpop.f32.mrb[0].mxu0
  %958 = vmatprep.mubr.f32.mxu0 %v542
  %959 = vmatmul.mubr.f32.gmra.mrb[0].mxu0 %v541
  %v960 = vpop.f32.mrb[0].mxu0
  %v961 = vadd.f32 %v816, %v960
  %v962 = vpop.f32.mrb[0].mxu0
  %963 = vmatprep.mubr.f32.mxu0 %v556
  %964 = vmatmul.mubr.f32.gmra.mrb[0].mxu0 %v555
  %v965 = vpop.f32.mrb[0].mxu0
  %v966 = vadd.f32 %v821, %v965
  %v967 = vpop.f32.mrb[0].mxu0
  %968 = vmatprep.mubr.f32.mxu0 %v570
  %969 = vmatmul.mubr.f32.gmra.mrb[0].mxu0 %v569
  %v970 = vpop.f32.mrb[0].mxu0
  %v971 = vadd.f32 %v826, %v970
  %v972 = vpop.f32.mrb[0].mxu0
  %973 = vmatprep.mubr.f32.mxu0 %v584
  %974 = vmatmul.mubr.f32.gmra.mrb[0].mxu0 %v583
  %v975 = vpop.f32.mrb[0].mxu0
  %v976 = vadd.f32 %v831, %v975
  %v977 = vpop.f32.mrb[0].mxu0
  %978 = vmatprep.mubr.f32.mxu0 %v598
  %979 = vmatmul.mubr.f32.gmra.mrb[0].mxu0 %v597
  %v980 = vpop.f32.mrb[0].mxu0
  %v981 = vadd.f32 %v836, %v980
  %v982 = vpop.f32.mrb[0].mxu0
  %983 = vmatprep.mubr.f32.mxu0 %v612
  %984 = vmatmul.mubr.f32.gmra.mrb[0].mxu0 %v611
  %v985 = vpop.f32.mrb[0].mxu0
  %v986 = vadd.f32 %v841, %v985
  %v987 = vpop.f32.mrb[0].mxu0
  %988 = vmatprep.mubr.f32.mxu0 %v626
  %989 = vmatmul.mubr.f32.gmra.mrb[0].mxu0 %v625
  %v990 = vpop.f32.mrb[0].mxu0
  %v991 = vadd.f32 %v846, %v990
  %v992 = vpop.f32.mrb[0].mxu0
  %993 = vmatprep.mubr.f32.mxu0 %v640
  %994 = vmatmul.mubr.f32.gmra.mrb[0].mxu0 %v639
  %v995 = vpop.f32.mrb[0].mxu0
  %v996 = vadd.f32 %v851, %v995
  %v997 = vpop.f32.mrb[0].mxu0
  %998 = vmatprep.mubr.f32.mxu0 %v654
  %999 = vmatmul.mubr.f32.gmra.mrb[0].mxu0 %v653
  %v1000 = vpop.f32.mrb[0].mxu0
  %v1001 = vadd.f32 %v856, %v1000
  %v1002 = vpop.f32.mrb[0].mxu0
  %1003 = vdwg.mxu0
  %1004 = vmatprep.subr.mxu0 0.0
  %1005 = vmatpush1.msra.mxu0 %v293
  %1006 = vmatprep.subr.mxu0 0.0
  %1007 = vmatpush1.msra.mxu0 %v294
  %1008 = vmatprep.subr.mxu0 0.0
  %1009 = vmatpush1.msra.mxu0 %v295
  %1010 = vmatprep.subr.mxu0 0.0
  %1011 = vmatpush1.msra.mxu0 %v296
  %1012 = vmatprep.subr.mxu0 0.0
  %1013 = vmatpush1.msra.mxu0 %v297
  %1014 = vmatprep.subr.mxu0 0.0
  %1015 = vmatpush1.msra.mxu0 %v298
  %1016 = vmatprep.subr.mxu0 0.0
  %1017 = vmatpush1.msra.mxu0 %v299
  %1018 = vmatprep.subr.mxu0 0.0
  %1019 = vmatpush1.msra.mxu0 %v300
  %1020 = vmatprep.subr.mxu0 0.0
  %1021 = vmatpush1.msra.mxu0 %v301
  %1022 = vmatprep.subr.mxu0 0.0
  %1023 = vmatpush1.msra.mxu0 %v302
  %1024 = vmatprep.subr.mxu0 0.0
  %1025 = vmatpush1.msra.mxu0 %v303
  %1026 = vmatprep.subr.mxu0 0.0
  %1027 = vmatpush1.msra.mxu0 %v304
  %1028 = vmatprep.subr.mxu0 0.0
  %1029 = vmatpush1.msra.mxu0 %v305
  %1030 = vmatprep.subr.mxu0 0.0
  %1031 = vmatpush1.msra.mxu0 %v306
  %1032 = vmatprep.subr.mxu0 0.0
  %1033 = vmatpush1.msra.mxu0 %v307
  %1034 = vmatprep.subr.mxu0 0.0
  %1035 = vmatpush1.msra.mxu0 %v308
  %1036 = vmatprep.subr.mxu0 0.0
  %1037 = vmatpush1.msra.mxu0 %v309
  %1038 = vmatprep.subr.mxu0 0.0
  %1039 = vmatpush1.msra.mxu0 %v310
  %1040 = vmatprep.subr.mxu0 0.0
  %1041 = vmatpush1.msra.mxu0 %v311
  %1042 = vmatprep.subr.mxu0 0.0
  %1043 = vmatpush1.msra.mxu0 %v312
  %1044 = vmatprep.subr.mxu0 0.0
  %1045 = vmatpush1.msra.mxu0 %v313
  %1046 = vmatprep.subr.mxu0 0.0
  %1047 = vmatpush1.msra.mxu0 %v314
  %1048 = vmatprep.subr.mxu0 0.0
  %1049 = vmatpush1.msra.mxu0 %v315
  %1050 = vmatprep.subr.mxu0 0.0
  %1051 = vmatpush1.msra.mxu0 %v316
  %1052 = vmatprep.subr.mxu0 0.0
  %1053 = vmatpush1.msra.mxu0 %v317
  %1054 = vmatprep.subr.mxu0 0.0
  %1055 = vmatpush1.msra.mxu0 %v318
  %1056 = vmatprep.subr.mxu0 0.0
  %1057 = vmatpush1.msra.mxu0 %v319
  %1058 = vmatprep.subr.mxu0 0.0
  %1059 = vmatpush1.msra.mxu0 %v320
  %1060 = vmatprep.subr.mxu0 0.0
  %1061 = vmatpush1.msra.mxu0 %v321
  %1062 = vmatprep.subr.mxu0 0.0
  %1063 = vmatpush1.msra.mxu0 %v322
  %1064 = vmatprep.subr.mxu0 0.0
  %1065 = vmatpush1.msra.mxu0 %v323
  %1066 = vmatprep.subr.mxu0 0.0
  %1067 = vmatpush1.msra.mxu0 %v324
  %1068 = vmatprep.mubr.f32.mxu0 %v446
  %1069 = vmatmul.mubr.f32.gmra.mrb[0].mxu0 %v445
  %v1070 = vpop.f32.mrb[0].mxu0
  %v1071 = vadd.f32 %v926, %v1070
  %v1072 = vpop.f32.mrb[0].mxu0
  %1073 = vmatprep.mubr.f32.mxu0 %v460
  %1074 = vmatmul.mubr.f32.gmra.mrb[0].mxu0 %v459
  %v1075 = vpop.f32.mrb[0].mxu0
  %v1076 = vadd.f32 %v931, %v1075
  %v1077 = vpop.f32.mrb[0].mxu0
  %1078 = vmatprep.mubr.f32.mxu0 %v474
  %1079 = vmatmul.mubr.f32.gmra.mrb[0].mxu0 %v473
  %v1080 = vpop.f32.mrb[0].mxu0
  %v1081 = vadd.f32 %v936, %v1080
  %v1082 = vpop.f32.mrb[0].mxu0
  %1083 = vmatprep.mubr.f32.mxu0 %v488
  %1084 = vmatmul.mubr.f32.gmra.mrb[0].mxu0 %v487
  %v1085 = vpop.f32.mrb[0].mxu0
  %v1086 = vadd.f32 %v941, %v1085
  %v1087 = vpop.f32.mrb[0].mxu0
  %1088 = vmatprep.mubr.f32.mxu0 %v502
  %1089 = vmatmul.mubr.f32.gmra.mrb[0].mxu0 %v501
  %v1090 = vpop.f32.mrb[0].mxu0
  %v1091 = vadd.f32 %v946, %v1090
  %v1092 = vpop.f32.mrb[0].mxu0
  %1093 = vmatprep.mubr.f32.mxu0 %v516
  %1094 = vmatmul.mubr.f32.gmra.mrb[0].mxu0 %v515
  %v1095 = vpop.f32.mrb[0].mxu0
  %v1096 = vadd.f32 %v951, %v1095
  %v1097 = vpop.f32.mrb[0].mxu0
  %1098 = vmatprep.mubr.f32.mxu0 %v530
  %1099 = vmatmul.mubr.f32.gmra.mrb[0].mxu0 %v529
  %v1100 = vpop.f32.mrb[0].mxu0
  %v1101 = vadd.f32 %v956, %v1100
  %v1102 = vpop.f32.mrb[0].mxu0
  %1103 = vmatprep.mubr.f32.mxu0 %v544
  %1104 = vmatmul.mubr.f32.gmra.mrb[0].mxu0 %v543
  %v1105 = vpop.f32.mrb[0].mxu0
  %v1106 = vadd.f32 %v961, %v1105
  %v1107 = vpop.f32.mrb[0].mxu0
  %1108 = vmatprep.mubr.f32.mxu0 %v558
  %1109 = vmatmul.mubr.f32.gmra.mrb[0].mxu0 %v557
  %v1110 = vpop.f32.mrb[0].mxu0
  %v1111 = vadd.f32 %v966, %v1110
  %v1112 = vpop.f32.mrb[0].mxu0
  %1113 = vmatprep.mubr.f32.mxu0 %v572
  %1114 = vmatmul.mubr.f32.gmra.mrb[0].mxu0 %v571
  %v1115 = vpop.f32.mrb[0].mxu0
  %v1116 = vadd.f32 %v971, %v1115
  %v1117 = vpop.f32.mrb[0].mxu0
  %1118 = vmatprep.mubr.f32.mxu0 %v586
  %1119 = vmatmul.mubr.f32.gmra.mrb[0].mxu0 %v585
  %v1120 = vpop.f32.mrb[0].mxu0
  %v1121 = vadd.f32 %v976, %v1120
  %v1122 = vpop.f32.mrb[0].mxu0
  %1123 = vmatprep.mubr.f32.mxu0 %v600
  %1124 = vmatmul.mubr.f32.gmra.mrb[0].mxu0 %v599
  %v1125 = vpop.f32.mrb[0].mxu0
  %v1126 = vadd.f32 %v981, %v1125
  %v1127 = vpop.f32.mrb[0].mxu0
  %1128 = vmatprep.mubr.f32.mxu0 %v614
  %1129 = vmatmul.mubr.f32.gmra.mrb[0].mxu0 %v613
  %v1130 = vpop.f32.mrb[0].mxu0
  %v1131 = vadd.f32 %v986, %v1130
  %v1132 = vpop.f32.mrb[0].mxu0
  %1133 = vmatprep.mubr.f32.mxu0 %v628
  %1134 = vmatmul.mubr.f32.gmra.mrb[0].mxu0 %v627
  %v1135 = vpop.f32.mrb[0].mxu0
  %v1136 = vadd.f32 %v991, %v1135
  %v1137 = vpop.f32.mrb[0].mxu0
  %1138 = vmatprep.mubr.f32.mxu0 %v642
  %1139 = vmatmul.mubr.f32.gmra.mrb[0].mxu0 %v641
  %v1140 = vpop.f32.mrb[0].mxu0
  %v1141 = vadd.f32 %v996, %v1140
  %v1142 = vpop.f32.mrb[0].mxu0
  %1143 = vmatprep.mubr.f32.mxu0 %v656
  %1144 = vmatmul.mubr.f32.gmra.mrb[0].mxu0 %v655
  %v1145 = vpop.f32.mrb[0].mxu0
  %v1146 = vadd.f32 %v1001, %v1145
  %v1147 = vpop.f32.mrb[0].mxu0
  %1148 = vdwg.mxu0
  %1149 = vmatprep.subr.mxu0 0.0
  %1150 = vmatpush1.msra.mxu0 %v325
  %1151 = vmatprep.subr.mxu0 0.0
  %1152 = vmatpush1.msra.mxu0 %v326
  %1153 = vmatprep.subr.mxu0 0.0
  %1154 = vmatpush1.msra.mxu0 %v327
  %1155 = vmatprep.subr.mxu0 0.0
  %1156 = vmatpush1.msra.mxu0 %v328
  %1157 = vmatprep.subr.mxu0 0.0
  %1158 = vmatpush1.msra.mxu0 %v329
  %1159 = vmatprep.subr.mxu0 0.0
  %1160 = vmatpush1.msra.mxu0 %v330
  %1161 = vmatprep.subr.mxu0 0.0
  %1162 = vmatpush1.msra.mxu0 %v331
  %1163 = vmatprep.subr.mxu0 0.0
  %1164 = vmatpush1.msra.mxu0 %v332
  %1165 = vmatprep.subr.mxu0 0.0
  %1166 = vmatpush1.msra.mxu0 %v333
  %1167 = vmatprep.subr.mxu0 0.0
  %1168 = vmatpush1.msra.mxu0 %v334
  %1169 = vmatprep.subr.mxu0 0.0
  %1170 = vmatpush1.msra.mxu0 %v335
  %1171 = vmatprep.subr.mxu0 0.0
  %1172 = vmatpush1.msra.mxu0 %v336
  %1173 = vmatprep.subr.mxu0 0.0
  %1174 = vmatpush1.msra.mxu0 %v337
  %1175 = vmatprep.subr.mxu0 0.0
  %1176 = vmatpush1.msra.mxu0 %v338
  %1177 = vmatprep.subr.mxu0 0.0
  %1178 = vmatpush1.msra.mxu0 %v339
  %1179 = vmatprep.subr.mxu0 0.0
  %1180 = vmatpush1.msra.mxu0 %v340
  %1181 = vmatprep.subr.mxu0 0.0
  %1182 = vmatpush1.msra.mxu0 %v341
  %1183 = vmatprep.subr.mxu0 0.0
  %1184 = vmatpush1.msra.mxu0 %v342
  %1185 = vmatprep.subr.mxu0 0.0
  %1186 = vmatpush1.msra.mxu0 %v343
  %1187 = vmatprep.subr.mxu0 0.0
  %1188 = vmatpush1.msra.mxu0 %v344
  %1189 = vmatprep.subr.mxu0 0.0
  %1190 = vmatpush1.msra.mxu0 %v345
  %1191 = vmatprep.subr.mxu0 0.0
  %1192 = vmatpush1.msra.mxu0 %v346
  %1193 = vmatprep.subr.mxu0 0.0
  %1194 = vmatpush1.msra.mxu0 %v347
  %1195 = vmatprep.subr.mxu0 0.0
  %1196 = vmatpush1.msra.mxu0 %v348
  %1197 = vmatprep.subr.mxu0 0.0
  %1198 = vmatpush1.msra.mxu0 %v349
  %1199 = vmatprep.subr.mxu0 0.0
  %1200 = vmatpush1.msra.mxu0 %v350
  %1201 = vmatprep.subr.mxu0 0.0
  %1202 = vmatpush1.msra.mxu0 %v351
  %1203 = vmatprep.subr.mxu0 0.0
  %1204 = vmatpush1.msra.mxu0 %v352
  %1205 = vmatprep.subr.mxu0 0.0
  %1206 = vmatpush1.msra.mxu0 %v353
  %1207 = vmatprep.subr.mxu0 0.0
  %1208 = vmatpush1.msra.mxu0 %v354
  %1209 = vmatprep.subr.mxu0 0.0
  %1210 = vmatpush1.msra.mxu0 %v355
  %1211 = vmatprep.subr.mxu0 0.0
  %1212 = vmatpush1.msra.mxu0 %v356
  %1213 = vmatprep.mubr.f32.mxu0 %v448
  %1214 = vmatmul.mubr.f32.gmra.mrb[0].mxu0 %v447
  %v1215 = vpop.f32.mrb[0].mxu0
  %v1216 = vadd.f32 %v1071, %v1215
  %v1217 = vpop.f32.mrb[0].mxu0
  %1218 = vmatprep.mubr.f32.mxu0 %v462
  %1219 = vmatmul.mubr.f32.gmra.mrb[0].mxu0 %v461
  %v1220 = vpop.f32.mrb[0].mxu0
  %v1221 = vadd.f32 %v1076, %v1220
  %v1222 = vpop.f32.mrb[0].mxu0
  %1223 = vmatprep.mubr.f32.mxu0 %v476
  %1224 = vmatmul.mubr.f32.gmra.mrb[0].mxu0 %v475
  %v1225 = vpop.f32.mrb[0].mxu0
  %v1226 = vadd.f32 %v1081, %v1225
  %v1227 = vpop.f32.mrb[0].mxu0
  %1228 = vmatprep.mubr.f32.mxu0 %v490
  %1229 = vmatmul.mubr.f32.gmra.mrb[0].mxu0 %v489
  %v1230 = vpop.f32.mrb[0].mxu0
  %v1231 = vadd.f32 %v1086, %v1230
  %v1232 = vpop.f32.mrb[0].mxu0
  %1233 = vmatprep.mubr.f32.mxu0 %v504
  %1234 = vmatmul.mubr.f32.gmra.mrb[0].mxu0 %v503
  %v1235 = vpop.f32.mrb[0].mxu0
  %v1236 = vadd.f32 %v1091, %v1235
  %v1237 = vpop.f32.mrb[0].mxu0
  %1238 = vmatprep.mubr.f32.mxu0 %v518
  %1239 = vmatmul.mubr.f32.gmra.mrb[0].mxu0 %v517
  %v1240 = vpop.f32.mrb[0].mxu0
  %v1241 = vadd.f32 %v1096, %v1240
  %v1242 = vpop.f32.mrb[0].mxu0
  %1243 = vmatprep.mubr.f32.mxu0 %v532
  %1244 = vmatmul.mubr.f32.gmra.mrb[0].mxu0 %v531
  %v1245 = vpop.f32.mrb[0].mxu0
  %v1246 = vadd.f32 %v1101, %v1245
  %v1247 = vpop.f32.mrb[0].mxu0
  %1248 = vmatprep.mubr.f32.mxu0 %v546
  %1249 = vmatmul.mubr.f32.gmra.mrb[0].mxu0 %v545
  %v1250 = vpop.f32.mrb[0].mxu0
  %v1251 = vadd.f32 %v1106, %v1250
  %v1252 = vpop.f32.mrb[0].mxu0
  %1253 = vmatprep.mubr.f32.mxu0 %v560
  %1254 = vmatmul.mubr.f32.gmra.mrb[0].mxu0 %v559
  %v1255 = vpop.f32.mrb[0].mxu0
  %v1256 = vadd.f32 %v1111, %v1255
  %v1257 = vpop.f32.mrb[0].mxu0
  %1258 = vmatprep.mubr.f32.mxu0 %v574
  %1259 = vmatmul.mubr.f32.gmra.mrb[0].mxu0 %v573
  %v1260 = vpop.f32.mrb[0].mxu0
  %v1261 = vadd.f32 %v1116, %v1260
  %v1262 = vpop.f32.mrb[0].mxu0
  %1263 = vmatprep.mubr.f32.mxu0 %v588
  %1264 = vmatmul.mubr.f32.gmra.mrb[0].mxu0 %v587
  %v1265 = vpop.f32.mrb[0].mxu0
  %v1266 = vadd.f32 %v1121, %v1265
  %v1267 = vpop.f32.mrb[0].mxu0
  %1268 = vmatprep.mubr.f32.mxu0 %v602
  %1269 = vmatmul.mubr.f32.gmra.mrb[0].mxu0 %v601
  %v1270 = vpop.f32.mrb[0].mxu0
  %v1271 = vadd.f32 %v1126, %v1270
  %v1272 = vpop.f32.mrb[0].mxu0
  %1273 = vmatprep.mubr.f32.mxu0 %v616
  %1274 = vmatmul.mubr.f32.gmra.mrb[0].mxu0 %v615
  %v1275 = vpop.f32.mrb[0].mxu0
  %v1276 = vadd.f32 %v1131, %v1275
  %v1277 = vpop.f32.mrb[0].mxu0
  %1278 = vmatprep.mubr.f32.mxu0 %v630
  %1279 = vmatmul.mubr.f32.gmra.mrb[0].mxu0 %v629
  %v1280 = vpop.f32.mrb[0].mxu0
  %v1281 = vadd.f32 %v1136, %v1280
  %v1282 = vpop.f32.mrb[0].mxu0
  %1283 = vmatprep.mubr.f32.mxu0 %v644
  %1284 = vmatmul.mubr.f32.gmra.mrb[0].mxu0 %v643
  %v1285 = vpop.f32.mrb[0].mxu0
  %v1286 = vadd.f32 %v1141, %v1285
  %v1287 = vpop.f32.mrb[0].mxu0
  %1288 = vmatprep.mubr.f32.mxu0 %v658
  %1289 = vmatmul.mubr.f32.gmra.mrb[0].mxu0 %v657
  %v1290 = vpop.f32.mrb[0].mxu0
  %v1291 = vadd.f32 %v1146, %v1290
  %v1292 = vpop.f32.mrb[0].mxu0
  %1293 = vdwg.mxu0
  %1294 = vmatprep.subr.mxu0 0.0
  %1295 = vmatpush1.msra.mxu0 %v357
  %1296 = vmatprep.subr.mxu0 0.0
  %1297 = vmatpush1.msra.mxu0 %v358
  %1298 = vmatprep.subr.mxu0 0.0
  %1299 = vmatpush1.msra.mxu0 %v359
  %1300 = vmatprep.subr.mxu0 0.0
  %1301 = vmatpush1.msra.mxu0 %v360
  %1302 = vmatprep.subr.mxu0 0.0
  %1303 = vmatpush1.msra.mxu0 %v361
  %1304 = vmatprep.subr.mxu0 0.0
  %1305 = vmatpush1.msra.mxu0 %v362
  %1306 = vmatprep.subr.mxu0 0.0
  %1307 = vmatpush1.msra.mxu0 %v363
  %1308 = vmatprep.subr.mxu0 0.0
  %1309 = vmatpush1.msra.mxu0 %v364
  %1310 = vmatprep.subr.mxu0 0.0
  %1311 = vmatpush1.msra.mxu0 %v365
  %1312 = vmatprep.subr.mxu0 0.0
  %1313 = vmatpush1.msra.mxu0 %v366
  %1314 = vmatprep.subr.mxu0 0.0
  %1315 = vmatpush1.msra.mxu0 %v367
  %1316 = vmatprep.subr.mxu0 0.0
  %1317 = vmatpush1.msra.mxu0 %v368
  %1318 = vmatprep.subr.mxu0 0.0
  %1319 = vmatpush1.msra.mxu0 %v369
  %1320 = vmatprep.subr.mxu0 0.0
  %1321 = vmatpush1.msra.mxu0 %v370
  %1322 = vmatprep.subr.mxu0 0.0
  %1323 = vmatpush1.msra.mxu0 %v371
  %1324 = vmatprep.subr.mxu0 0.0
  %1325 = vmatpush1.msra.mxu0 %v372
  %1326 = vmatprep.subr.mxu0 0.0
  %1327 = vmatpush1.msra.mxu0 %v373
  %1328 = vmatprep.subr.mxu0 0.0
  %1329 = vmatpush1.msra.mxu0 %v374
  %1330 = vmatprep.subr.mxu0 0.0
  %1331 = vmatpush1.msra.mxu0 %v375
  %1332 = vmatprep.subr.mxu0 0.0
  %1333 = vmatpush1.msra.mxu0 %v376
  %1334 = vmatprep.subr.mxu0 0.0
  %1335 = vmatpush1.msra.mxu0 %v377
  %1336 = vmatprep.subr.mxu0 0.0
  %1337 = vmatpush1.msra.mxu0 %v378
  %1338 = vmatprep.subr.mxu0 0.0
  %1339 = vmatpush1.msra.mxu0 %v379
  %1340 = vmatprep.subr.mxu0 0.0
  %1341 = vmatpush1.msra.mxu0 %v380
  %1342 = vmatprep.subr.mxu0 0.0
  %1343 = vmatpush1.msra.mxu0 %v381
  %1344 = vmatprep.subr.mxu0 0.0
  %1345 = vmatpush1.msra.mxu0 %v382
  %1346 = vmatprep.subr.mxu0 0.0
  %1347 = vmatpush1.msra.mxu0 %v383
  %1348 = vmatprep.subr.mxu0 0.0
  %1349 = vmatpush1.msra.mxu0 %v384
  %1350 = vmatprep.subr.mxu0 0.0
  %1351 = vmatpush1.msra.mxu0 %v385
  %1352 = vmatprep.subr.mxu0 0.0
  %1353 = vmatpush1.msra.mxu0 %v386
  %1354 = vmatprep.subr.mxu0 0.0
  %1355 = vmatpush1.msra.mxu0 %v387
  %1356 = vmatprep.subr.mxu0 0.0
  %1357 = vmatpush1.msra.mxu0 %v388
  %1358 = vmatprep.mubr.f32.mxu0 %v450
  %1359 = vmatmul.mubr.f32.gmra.mrb[0].mxu0 %v449
  %v1360 = vpop.f32.mrb[0].mxu0
  %v1361 = vadd.f32 %v1216, %v1360
  %v1362 = vpop.f32.mrb[0].mxu0
  %1363 = vmatprep.mubr.f32.mxu0 %v464
  %1364 = vmatmul.mubr.f32.gmra.mrb[0].mxu0 %v463
  %v1365 = vpop.f32.mrb[0].mxu0
  %v1366 = vadd.f32 %v1221, %v1365
  %v1367 = vpop.f32.mrb[0].mxu0
  %1368 = vmatprep.mubr.f32.mxu0 %v478
  %1369 = vmatmul.mubr.f32.gmra.mrb[0].mxu0 %v477
  %v1370 = vpop.f32.mrb[0].mxu0
  %v1371 = vadd.f32 %v1226, %v1370
  %v1372 = vpop.f32.mrb[0].mxu0
  %1373 = vmatprep.mubr.f32.mxu0 %v492
  %1374 = vmatmul.mubr.f32.gmra.mrb[0].mxu0 %v491
  %v1375 = vpop.f32.mrb[0].mxu0
  %v1376 = vadd.f32 %v1231, %v1375
  %v1377 = vpop.f32.mrb[0].mxu0
  %1378 = vmatprep.mubr.f32.mxu0 %v506
  %1379 = vmatmul.mubr.f32.gmra.mrb[0].mxu0 %v505
  %v1380 = vpop.f32.mrb[0].mxu0
  %v1381 = vadd.f32 %v1236, %v1380
  %v1382 = vpop.f32.mrb[0].mxu0
  %1383 = vmatprep.mubr.f32.mxu0 %v520
  %1384 = vmatmul.mubr.f32.gmra.mrb[0].mxu0 %v519
  %v1385 = vpop.f32.mrb[0].mxu0
  %v1386 = vadd.f32 %v1241, %v1385
  %v1387 = vpop.f32.mrb[0].mxu0
  %1388 = vmatprep.mubr.f32.mxu0 %v534
  %1389 = vmatmul.mubr.f32.gmra.mrb[0].mxu0 %v533
  %v1390 = vpop.f32.mrb[0].mxu0
  %v1391 = vadd.f32 %v1246, %v1390
  %v1392 = vpop.f32.mrb[0].mxu0
  %1393 = vmatprep.mubr.f32.mxu0 %v548
  %1394 = vmatmul.mubr.f32.gmra.mrb[0].mxu0 %v547
  %v1395 = vpop.f32.mrb[0].mxu0
  %v1396 = vadd.f32 %v1251, %v1395
  %v1397 = vpop.f32.mrb[0].mxu0
  %1398 = vmatprep.mubr.f32.mxu0 %v562
  %1399 = vmatmul.mubr.f32.gmra.mrb[0].mxu0 %v561
  %v1400 = vpop.f32.mrb[0].mxu0
  %v1401 = vadd.f32 %v1256, %v1400
  %v1402 = vpop.f32.mrb[0].mxu0
  %1403 = vmatprep.mubr.f32.mxu0 %v576
  %1404 = vmatmul.mubr.f32.gmra.mrb[0].mxu0 %v575
  %v1405 = vpop.f32.mrb[0].mxu0
  %v1406 = vadd.f32 %v1261, %v1405
  %v1407 = vpop.f32.mrb[0].mxu0
  %1408 = vmatprep.mubr.f32.mxu0 %v590
  %1409 = vmatmul.mubr.f32.gmra.mrb[0].mxu0 %v589
  %v1410 = vpop.f32.mrb[0].mxu0
  %v1411 = vadd.f32 %v1266, %v1410
  %v1412 = vpop.f32.mrb[0].mxu0
  %1413 = vmatprep.mubr.f32.mxu0 %v604
  %1414 = vmatmul.mubr.f32.gmra.mrb[0].mxu0 %v603
  %v1415 = vpop.f32.mrb[0].mxu0
  %v1416 = vadd.f32 %v1271, %v1415
  %v1417 = vpop.f32.mrb[0].mxu0
  %1418 = vmatprep.mubr.f32.mxu0 %v618
  %1419 = vmatmul.mubr.f32.gmra.mrb[0].mxu0 %v617
  %v1420 = vpop.f32.mrb[0].mxu0
  %v1421 = vadd.f32 %v1276, %v1420
  %v1422 = vpop.f32.mrb[0].mxu0
  %1423 = vmatprep.mubr.f32.mxu0 %v632
  %1424 = vmatmul.mubr.f32.gmra.mrb[0].mxu0 %v631
  %v1425 = vpop.f32.mrb[0].mxu0
  %v1426 = vadd.f32 %v1281, %v1425
  %v1427 = vpop.f32.mrb[0].mxu0
  %1428 = vmatprep.mubr.f32.mxu0 %v646
  %1429 = vmatmul.mubr.f32.gmra.mrb[0].mxu0 %v645
  %v1430 = vpop.f32.mrb[0].mxu0
  %v1431 = vadd.f32 %v1286, %v1430
  %v1432 = vpop.f32.mrb[0].mxu0
  %1433 = vmatprep.mubr.f32.mxu0 %v660
  %1434 = vmatmul.mubr.f32.gmra.mrb[0].mxu0 %v659
  %v1435 = vpop.f32.mrb[0].mxu0
  %v1436 = vadd.f32 %v1291, %v1435
  %v1437 = vpop.f32.mrb[0].mxu0
  %1438 = vdwg.mxu0
  %1439 = vmatprep.subr.mxu0 0.0
  %1440 = vmatpush1.msra.mxu0 %v389
  %1441 = vmatprep.subr.mxu0 0.0
  %1442 = vmatpush1.msra.mxu0 %v390
  %1443 = vmatprep.subr.mxu0 0.0
  %1444 = vmatpush1.msra.mxu0 %v391
  %1445 = vmatprep.subr.mxu0 0.0
  %1446 = vmatpush1.msra.mxu0 %v392
  %1447 = vmatprep.subr.mxu0 0.0
  %1448 = vmatpush1.msra.mxu0 %v393
  %1449 = vmatprep.subr.mxu0 0.0
  %1450 = vmatpush1.msra.mxu0 %v394
  %1451 = vmatprep.subr.mxu0 0.0
  %1452 = vmatpush1.msra.mxu0 %v395
  %1453 = vmatprep.subr.mxu0 0.0
  %1454 = vmatpush1.msra.mxu0 %v396
  %1455 = vmatprep.subr.mxu0 0.0
  %1456 = vmatpush1.msra.mxu0 %v397
  %1457 = vmatprep.subr.mxu0 0.0
  %1458 = vmatpush1.msra.mxu0 %v398
  %1459 = vmatprep.subr.mxu0 0.0
  %1460 = vmatpush1.msra.mxu0 %v399
  %1461 = vmatprep.subr.mxu0 0.0
  %1462 = vmatpush1.msra.mxu0 %v400
  %1463 = vmatprep.subr.mxu0 0.0
  %1464 = vmatpush1.msra.mxu0 %v401
  %1465 = vmatprep.subr.mxu0 0.0
  %1466 = vmatpush1.msra.mxu0 %v402
  %1467 = vmatprep.subr.mxu0 0.0
  %1468 = vmatpush1.msra.mxu0 %v403
  %1469 = vmatprep.subr.mxu0 0.0
  %1470 = vmatpush1.msra.mxu0 %v404
  %1471 = vmatprep.subr.mxu0 0.0
  %1472 = vmatpush1.msra.mxu0 %v405
  %1473 = vmatprep.subr.mxu0 0.0
  %1474 = vmatpush1.msra.mxu0 %v406
  %1475 = vmatprep.subr.mxu0 0.0
  %1476 = vmatpush1.msra.mxu0 %v407
  %1477 = vmatprep.subr.mxu0 0.0
  %1478 = vmatpush1.msra.mxu0 %v408
  %1479 = vmatprep.subr.mxu0 0.0
  %1480 = vmatpush1.msra.mxu0 %v409
  %1481 = vmatprep.subr.mxu0 0.0
  %1482 = vmatpush1.msra.mxu0 %v410
  %1483 = vmatprep.subr.mxu0 0.0
  %1484 = vmatpush1.msra.mxu0 %v411
  %1485 = vmatprep.subr.mxu0 0.0
  %1486 = vmatpush1.msra.mxu0 %v412
  %1487 = vmatprep.subr.mxu0 0.0
  %1488 = vmatpush1.msra.mxu0 %v413
  %1489 = vmatprep.subr.mxu0 0.0
  %1490 = vmatpush1.msra.mxu0 %v414
  %1491 = vmatprep.subr.mxu0 0.0
  %1492 = vmatpush1.msra.mxu0 %v415
  %1493 = vmatprep.subr.mxu0 0.0
  %1494 = vmatpush1.msra.mxu0 %v416
  %1495 = vmatprep.subr.mxu0 0.0
  %1496 = vmatpush1.msra.mxu0 %v417
  %1497 = vmatprep.subr.mxu0 0.0
  %1498 = vmatpush1.msra.mxu0 %v418
  %1499 = vmatprep.subr.mxu0 0.0
  %1500 = vmatpush1.msra.mxu0 %v419
  %1501 = vmatprep.subr.mxu0 0.0
  %1502 = vmatpush1.msra.mxu0 %v420
  %1503 = vmatprep.mubr.f32.mxu0 %v452
  %1504 = vmatmul.mubr.f32.gmra.mrb[0].mxu0 %v451
  %v1505 = vpop.f32.mrb[0].mxu0
  %v1506 = vadd.f32 %v1361, %v1505
  %v1507 = vpop.f32.mrb[0].mxu0
  %1508 = vmatprep.mubr.f32.mxu0 %v466
  %1509 = vmatmul.mubr.f32.gmra.mrb[0].mxu0 %v465
  %v1510 = vpop.f32.mrb[0].mxu0
  %v1511 = vadd.f32 %v1366, %v1510
  %v1512 = vpop.f32.mrb[0].mxu0
  %1513 = vmatprep.mubr.f32.mxu0 %v480
  %1514 = vmatmul.mubr.f32.gmra.mrb[0].mxu0 %v479
  %v1515 = vpop.f32.mrb[0].mxu0
  %v1516 = vadd.f32 %v1371, %v1515
  %v1517 = vpop.f32.mrb[0].mxu0
  %1518 = vmatprep.mubr.f32.mxu0 %v494
  %1519 = vmatmul.mubr.f32.gmra.mrb[0].mxu0 %v493
  %v1520 = vpop.f32.mrb[0].mxu0
  %v1521 = vadd.f32 %v1376, %v1520
  %v1522 = vpop.f32.mrb[0].mxu0
  %1523 = vmatprep.mubr.f32.mxu0 %v508
  %1524 = vmatmul.mubr.f32.gmra.mrb[0].mxu0 %v507
  %v1525 = vpop.f32.mrb[0].mxu0
  %v1526 = vadd.f32 %v1381, %v1525
  %v1527 = vpop.f32.mrb[0].mxu0
  %1528 = vmatprep.mubr.f32.mxu0 %v522
  %1529 = vmatmul.mubr.f32.gmra.mrb[0].mxu0 %v521
  %v1530 = vpop.f32.mrb[0].mxu0
  %v1531 = vadd.f32 %v1386, %v1530
  %v1532 = vpop.f32.mrb[0].mxu0
  %1533 = vmatprep.mubr.f32.mxu0 %v536
  %1534 = vmatmul.mubr.f32.gmra.mrb[0].mxu0 %v535
  %v1535 = vpop.f32.mrb[0].mxu0
  %v1536 = vadd.f32 %v1391, %v1535
  %v1537 = vpop.f32.mrb[0].mxu0
  %1538 = vmatprep.mubr.f32.mxu0 %v550
  %1539 = vmatmul.mubr.f32.gmra.mrb[0].mxu0 %v549
  %v1540 = vpop.f32.mrb[0].mxu0
  %v1541 = vadd.f32 %v1396, %v1540
  %v1542 = vpop.f32.mrb[0].mxu0
  %1543 = vmatprep.mubr.f32.mxu0 %v564
  %1544 = vmatmul.mubr.f32.gmra.mrb[0].mxu0 %v563
  %v1545 = vpop.f32.mrb[0].mxu0
  %v1546 = vadd.f32 %v1401, %v1545
  %v1547 = vpop.f32.mrb[0].mxu0
  %1548 = vmatprep.mubr.f32.mxu0 %v578
  %1549 = vmatmul.mubr.f32.gmra.mrb[0].mxu0 %v577
  %v1550 = vpop.f32.mrb[0].mxu0
  %v1551 = vadd.f32 %v1406, %v1550
  %v1552 = vpop.f32.mrb[0].mxu0
  %1553 = vmatprep.mubr.f32.mxu0 %v592
  %1554 = vmatmul.mubr.f32.gmra.mrb[0].mxu0 %v591
  %v1555 = vpop.f32.mrb[0].mxu0
  %v1556 = vadd.f32 %v1411, %v1555
  %v1557 = vpop.f32.mrb[0].mxu0
  %1558 = vmatprep.mubr.f32.mxu0 %v606
  %1559 = vmatmul.mubr.f32.gmra.mrb[0].mxu0 %v605
  %v1560 = vpop.f32.mrb[0].mxu0
  %v1561 = vadd.f32 %v1416, %v1560
  %v1562 = vpop.f32.mrb[0].mxu0
  %1563 = vmatprep.mubr.f32.mxu0 %v620
  %1564 = vmatmul.mubr.f32.gmra.mrb[0].mxu0 %v619
  %v1565 = vpop.f32.mrb[0].mxu0
  %v1566 = vadd.f32 %v1421, %v1565
  %v1567 = vpop.f32.mrb[0].mxu0
  %1568 = vmatprep.mubr.f32.mxu0 %v634
  %1569 = vmatmul.mubr.f32.gmra.mrb[0].mxu0 %v633
  %v1570 = vpop.f32.mrb[0].mxu0
  %v1571 = vadd.f32 %v1426, %v1570
  %v1572 = vpop.f32.mrb[0].mxu0
  %1573 = vmatprep.mubr.f32.mxu0 %v648
  %1574 = vmatmul.mubr.f32.gmra.mrb[0].mxu0 %v647
  %v1575 = vpop.f32.mrb[0].mxu0
  %v1576 = vadd.f32 %v1431, %v1575
  %v1577 = vpop.f32.mrb[0].mxu0
  %1578 = vmatprep.mubr.f32.mxu0 %v662
  %1579 = vmatmul.mubr.f32.gmra.mrb[0].mxu0 %v661
  %v1580 = vpop.f32.mrb[0].mxu0
  %v1581 = vadd.f32 %v1436, %v1580
  %v1582 = vpop.f32.mrb[0].mxu0
  %1583 = vdwg.mxu0
  %1584 = vmatprep.subr.mxu0 0.0
  %1585 = vmatpush1.msra.mxu0 %v421
  %1586 = vmatprep.subr.mxu0 0.0
  %1587 = vmatpush1.msra.mxu0 %v422
  %1588 = vmatprep.subr.mxu0 0.0
  %1589 = vmatpush1.msra.mxu0 %v423
  %1590 = vmatprep.subr.mxu0 0.0
  %1591 = vmatpush1.msra.mxu0 %v424
  %1592 = vmatprep.subr.mxu0 0.0
  %1593 = vmatpush1.msra.mxu0 %v425
  %1594 = vmatprep.subr.mxu0 0.0
  %1595 = vmatpush1.msra.mxu0 %v426
  %1596 = vmatprep.subr.mxu0 0.0
  %1597 = vmatpush1.msra.mxu0 %v427
  %1598 = vmatprep.subr.mxu0 0.0
  %1599 = vmatpush1.msra.mxu0 %v428
  %1600 = vmatprep.subr.mxu0 0.0
  %1601 = vmatpush1.msra.mxu0 %v429
  %1602 = vmatprep.subr.mxu0 0.0
  %1603 = vmatpush1.msra.mxu0 %v430
  %1604 = vmatprep.subr.mxu0 0.0
  %1605 = vmatpush1.msra.mxu0 %v431
  %1606 = vmatprep.subr.mxu0 0.0
  %1607 = vmatpush1.msra.mxu0 %v432
  %1608 = vmatprep.subr.mxu0 0.0
  %1609 = vmatpush1.msra.mxu0 %v433
  %1610 = vmatprep.subr.mxu0 0.0
  %1611 = vmatpush1.msra.mxu0 %v434
  %1612 = vmatprep.subr.mxu0 0.0
  %1613 = vmatpush1.msra.mxu0 %v435
  %1614 = vmatprep.subr.mxu0 0.0
  %1615 = vmatpush1.msra.mxu0 %v436
  %1616 = vmatprep.subr.mxu0 0.0
  %1617 = vmatpush1.msra.mxu0 %v437
  %1618 = vmatprep.subr.mxu0 0.0
  %1619 = vmatpush1.msra.mxu0 %v438
  %1620 = vmatprep.subr.mxu0 0.0
  %1621 = vmatpush1.msra.mxu0 %v439
  %1622 = vmatprep.subr.mxu0 0.0
  %1623 = vmatpush1.msra.mxu0 %v440
  %1624 = vmatprep.subr.mxu0 0.0
  %1625 = vmatpush1.msra.mxu0 0.0
  %1626 = vmatprep.subr.mxu0 0.0
  %1627 = vmatpush1.msra.mxu0 0.0
  %1628 = vmatprep.subr.mxu0 0.0
  %1629 = vmatpush1.msra.mxu0 0.0
  %1630 = vmatprep.subr.mxu0 0.0
  %1631 = vmatpush1.msra.mxu0 0.0
  %1632 = vmatprep.subr.mxu0 0.0
  %1633 = vmatpush1.msra.mxu0 0.0
  %1634 = vmatprep.subr.mxu0 0.0
  %1635 = vmatpush1.msra.mxu0 0.0
  %1636 = vmatprep.subr.mxu0 0.0
  %1637 = vmatpush1.msra.mxu0 0.0
  %1638 = vmatprep.subr.mxu0 0.0
  %1639 = vmatpush1.msra.mxu0 0.0
  %1640 = vmatprep.subr.mxu0 0.0
  %1641 = vmatpush1.msra.mxu0 0.0
  %1642 = vmatprep.subr.mxu0 0.0
  %1643 = vmatpush1.msra.mxu0 0.0
  %1644 = vmatprep.subr.mxu0 0.0
  %1645 = vmatpush1.msra.mxu0 0.0
  %1646 = vmatprep.subr.mxu0 0.0
  %1647 = vmatpush1.msra.mxu0 0.0
  %1648 = vmatprep.mubr.f32.mxu0 %v667
  %1649 = vmatmul.mubr.f32.gmra.mrb[0].mxu0 %v453
  %v1650 = vpop.f32.mrb[0].mxu0
  %v1651 = vadd.f32 %v1506, %v1650
  %v1652 = vpop.f32.mrb[0].mxu0
  %1653 = vmatprep.mubr.f32.mxu0 %v670
  %1654 = vmatmul.mubr.f32.gmra.mrb[0].mxu0 %v467
  %v1655 = vpop.f32.mrb[0].mxu0
  %v1656 = vadd.f32 %v1511, %v1655
  %v1657 = vpop.f32.mrb[0].mxu0
  %1658 = vmatprep.mubr.f32.mxu0 %v673
  %1659 = vmatmul.mubr.f32.gmra.mrb[0].mxu0 %v481
  %v1660 = vpop.f32.mrb[0].mxu0
  %v1661 = vadd.f32 %v1516, %v1660
  %v1662 = vpop.f32.mrb[0].mxu0
  %1663 = vmatprep.mubr.f32.mxu0 %v676
  %1664 = vmatmul.mubr.f32.gmra.mrb[0].mxu0 %v495
  %v1665 = vpop.f32.mrb[0].mxu0
  %v1666 = vadd.f32 %v1521, %v1665
  %v1667 = vpop.f32.mrb[0].mxu0
  %1668 = vmatprep.mubr.f32.mxu0 %v679
  %1669 = vmatmul.mubr.f32.gmra.mrb[0].mxu0 %v509
  %v1670 = vpop.f32.mrb[0].mxu0
  %v1671 = vadd.f32 %v1526, %v1670
  %v1672 = vpop.f32.mrb[0].mxu0
  %1673 = vmatprep.mubr.f32.mxu0 %v682
  %1674 = vmatmul.mubr.f32.gmra.mrb[0].mxu0 %v523
  %v1675 = vpop.f32.mrb[0].mxu0
  %v1676 = vadd.f32 %v1531, %v1675
  %v1677 = vpop.f32.mrb[0].mxu0
  %1678 = vmatprep.mubr.f32.mxu0 %v685
  %1679 = vmatmul.mubr.f32.gmra.mrb[0].mxu0 %v537
  %v1680 = vpop.f32.mrb[0].mxu0
  %v1681 = vadd.f32 %v1536, %v1680
  %v1682 = vpop.f32.mrb[0].mxu0
  %1683 = vmatprep.mubr.f32.mxu0 %v688
  %1684 = vmatmul.mubr.f32.gmra.mrb[0].mxu0 %v551
  %v1685 = vpop.f32.mrb[0].mxu0
  %v1686 = vadd.f32 %v1541, %v1685
  %v1687 = vpop.f32.mrb[0].mxu0
  %1688 = vmatprep.mubr.f32.mxu0 %v691
  %1689 = vmatmul.mubr.f32.gmra.mrb[0].mxu0 %v565
  %v1690 = vpop.f32.mrb[0].mxu0
  %v1691 = vadd.f32 %v1546, %v1690
  %v1692 = vpop.f32.mrb[0].mxu0
  %1693 = vmatprep.mubr.f32.mxu0 %v694
  %1694 = vmatmul.mubr.f32.gmra.mrb[0].mxu0 %v579
  %v1695 = vpop.f32.mrb[0].mxu0
  %v1696 = vadd.f32 %v1551, %v1695
  %v1697 = vpop.f32.mrb[0].mxu0
  %1698 = vmatprep.mubr.f32.mxu0 %v697
  %1699 = vmatmul.mubr.f32.gmra.mrb[0].mxu0 %v593
  %v1700 = vpop.f32.mrb[0].mxu0
  %v1701 = vadd.f32 %v1556, %v1700
  %v1702 = vpop.f32.mrb[0].mxu0
  %1703 = vmatprep.mubr.f32.mxu0 %v700
  %1704 = vmatmul.mubr.f32.gmra.mrb[0].mxu0 %v607
  %v1705 = vpop.f32.mrb[0].mxu0
  %v1706 = vadd.f32 %v1561, %v1705
  %v1707 = vpop.f32.mrb[0].mxu0
  %1708 = vmatprep.mubr.f32.mxu0 %v703
  %1709 = vmatmul.mubr.f32.gmra.mrb[0].mxu0 %v621
  %v1710 = vpop.f32.mrb[0].mxu0
  %v1711 = vadd.f32 %v1566, %v1710
  %v1712 = vpop.f32.mrb[0].mxu0
  %1713 = vmatprep.mubr.f32.mxu0 %v706
  %1714 = vmatmul.mubr.f32.gmra.mrb[0].mxu0 %v635
  %v1715 = vpop.f32.mrb[0].mxu0
  %v1716 = vadd.f32 %v1571, %v1715
  %v1717 = vpop.f32.mrb[0].mxu0
  %1718 = vmatprep.mubr.f32.mxu0 %v709
  %1719 = vmatmul.mubr.f32.gmra.mrb[0].mxu0 %v649
  %v1720 = vpop.f32.mrb[0].mxu0
  %v1721 = vadd.f32 %v1576, %v1720
  %v1722 = vpop.f32.mrb[0].mxu0
  %1723 = vmatprep.mubr.f32.mxu0 %v712
  %1724 = vmatmul.mubr.f32.gmra.mrb[0].mxu0 %v663
  %v1725 = vpop.f32.mrb[0].mxu0
  %v1726 = vadd.f32 %v1581, %v1725
  %v1727 = vpop.f32.mrb[0].mxu0
  %1728 = vdwg.mxu0
  %vm1729 = vcmask 400384
  %v1730 = vsel %vm1729, %v1651, 0.0
  %1731 = vadd.xlane.f32.xlu0 %v1730
  %v1732 = vpop.xlane.xlu0 %1731
  %v1733 = vsel %vm1729, %v1656, 0.0
  %1734 = vadd.xlane.f32.xlu0 %v1733
  %v1735 = vpop.xlane.xlu0 %1734
  %v1736 = vsel %vm1729, %v1661, 0.0
  %1737 = vadd.xlane.f32.xlu0 %v1736
  %v1738 = vpop.xlane.xlu0 %1737
  %v1739 = vsel %vm1729, %v1666, 0.0
  %1740 = vadd.xlane.f32.xlu0 %v1739
  %v1741 = vpop.xlane.xlu0 %1740
  %v1742 = vsel %vm1729, %v1671, 0.0
  %1743 = vadd.xlane.f32.xlu0 %v1742
  %v1744 = vpop.xlane.xlu0 %1743
  %v1745 = vsel %vm1729, %v1676, 0.0
  %1746 = vadd.xlane.f32.xlu0 %v1745
  %v1747 = vpop.xlane.xlu0 %1746
  %v1748 = vsel %vm1729, %v1681, 0.0
  %1749 = vadd.xlane.f32.xlu0 %v1748
  %v1750 = vpop.xlane.xlu0 %1749
  %v1751 = vsel %vm1729, %v1686, 0.0
  %1752 = vadd.xlane.f32.xlu0 %v1751
  %v1753 = vpop.xlane.xlu0 %1752
  %v1754 = vsel %vm1729, %v1691, 0.0
  %1755 = vadd.xlane.f32.xlu0 %v1754
  %v1756 = vpop.xlane.xlu0 %1755
  %v1757 = vsel %vm1729, %v1696, 0.0
  %1758 = vadd.xlane.f32.xlu0 %v1757
  %v1759 = vpop.xlane.xlu0 %1758
  %v1760 = vsel %vm1729, %v1701, 0.0
  %1761 = vadd.xlane.f32.xlu0 %v1760
  %v1762 = vpop.xlane.xlu0 %1761
  %v1763 = vsel %vm1729, %v1706, 0.0
  %1764 = vadd.xlane.f32.xlu0 %v1763
  %v1765 = vpop.xlane.xlu0 %1764
  %v1766 = vsel %vm1729, %v1711, 0.0
  %1767 = vadd.xlane.f32.xlu0 %v1766
  %v1768 = vpop.xlane.xlu0 %1767
  %v1769 = vsel %vm1729, %v1716, 0.0
  %1770 = vadd.xlane.f32.xlu0 %v1769
  %v1771 = vpop.xlane.xlu0 %1770
  %v1772 = vsel %vm1729, %v1721, 0.0
  %1773 = vadd.xlane.f32.xlu0 %v1772
  %v1774 = vpop.xlane.xlu0 %1773
  %v1775 = vsel %vm1729, %v1726, 0.0
  %1776 = vadd.xlane.f32.xlu0 %v1775
  %v1777 = vpop.xlane.xlu0 %1776
  %v1778 = vmul.f32 %v1651, %v1651
  %v1779 = vmul.f32 %v1656, %v1656
  %v1780 = vmul.f32 %v1661, %v1661
  %v1781 = vmul.f32 %v1666, %v1666
  %v1782 = vmul.f32 %v1671, %v1671
  %v1783 = vmul.f32 %v1676, %v1676
  %v1784 = vmul.f32 %v1681, %v1681
  %v1785 = vmul.f32 %v1686, %v1686
  %v1786 = vmul.f32 %v1691, %v1691
  %v1787 = vmul.f32 %v1696, %v1696
  %v1788 = vmul.f32 %v1701, %v1701
  %v1789 = vmul.f32 %v1706, %v1706
  %v1790 = vmul.f32 %v1711, %v1711
  %v1791 = vmul.f32 %v1716, %v1716
  %v1792 = vmul.f32 %v1721, %v1721
  %v1793 = vmul.f32 %v1726, %v1726
  %v1794 = vsel %vm1729, %v1778, 0.0
  %1795 = vadd.xlane.f32.xlu0 %v1794
  %v1796 = vpop.xlane.xlu0 %1795
  %v1797 = vsel %vm1729, %v1779, 0.0
  %1798 = vadd.xlane.f32.xlu0 %v1797
  %v1799 = vpop.xlane.xlu0 %1798
  %v1800 = vsel %vm1729, %v1780, 0.0
  %1801 = vadd.xlane.f32.xlu0 %v1800
  %v1802 = vpop.xlane.xlu0 %1801
  %v1803 = vsel %vm1729, %v1781, 0.0
  %1804 = vadd.xlane.f32.xlu0 %v1803
  %v1805 = vpop.xlane.xlu0 %1804
  %v1806 = vsel %vm1729, %v1782, 0.0
  %1807 = vadd.xlane.f32.xlu0 %v1806
  %v1808 = vpop.xlane.xlu0 %1807
  %v1809 = vsel %vm1729, %v1783, 0.0
  %1810 = vadd.xlane.f32.xlu0 %v1809
  %v1811 = vpop.xlane.xlu0 %1810
  %v1812 = vsel %vm1729, %v1784, 0.0
  %1813 = vadd.xlane.f32.xlu0 %v1812
  %v1814 = vpop.xlane.xlu0 %1813
  %v1815 = vsel %vm1729, %v1785, 0.0
  %1816 = vadd.xlane.f32.xlu0 %v1815
  %v1817 = vpop.xlane.xlu0 %1816
  %v1818 = vsel %vm1729, %v1786, 0.0
  %1819 = vadd.xlane.f32.xlu0 %v1818
  %v1820 = vpop.xlane.xlu0 %1819
  %v1821 = vsel %vm1729, %v1787, 0.0
  %1822 = vadd.xlane.f32.xlu0 %v1821
  %v1823 = vpop.xlane.xlu0 %1822
  %v1824 = vsel %vm1729, %v1788, 0.0
  %1825 = vadd.xlane.f32.xlu0 %v1824
  %v1826 = vpop.xlane.xlu0 %1825
  %v1827 = vsel %vm1729, %v1789, 0.0
  %1828 = vadd.xlane.f32.xlu0 %v1827
  %v1829 = vpop.xlane.xlu0 %1828
  %v1830 = vsel %vm1729, %v1790, 0.0
  %1831 = vadd.xlane.f32.xlu0 %v1830
  %v1832 = vpop.xlane.xlu0 %1831
  %v1833 = vsel %vm1729, %v1791, 0.0
  %1834 = vadd.xlane.f32.xlu0 %v1833
  %v1835 = vpop.xlane.xlu0 %1834
  %v1836 = vsel %vm1729, %v1792, 0.0
  %1837 = vadd.xlane.f32.xlu0 %v1836
  %v1838 = vpop.xlane.xlu0 %1837
  %v1839 = vsel %vm1729, %v1793, 0.0
  %1840 = vadd.xlane.f32.xlu0 %v1839
  %v1841 = vpop.xlane.xlu0 %1840
  %v1842 = vmul.f32 %v1732, 0.020408163
  %v1843 = vmul.f32 %v1735, 0.020408163
  %v1844 = vmul.f32 %v1738, 0.020408163
  %v1845 = vmul.f32 %v1741, 0.020408163
  %v1846 = vmul.f32 %v1744, 0.020408163
  %v1847 = vmul.f32 %v1747, 0.020408163
  %v1848 = vmul.f32 %v1750, 0.020408163
  %v1849 = vmul.f32 %v1753, 0.020408163
  %v1850 = vmul.f32 %v1756, 0.020408163
  %v1851 = vmul.f32 %v1759, 0.020408163
  %v1852 = vmul.f32 %v1762, 0.020408163
  %v1853 = vmul.f32 %v1765, 0.020408163
  %v1854 = vmul.f32 %v1768, 0.020408163
  %v1855 = vmul.f32 %v1771, 0.020408163
  %v1856 = vmul.f32 %v1774, 0.020408163
  %v1857 = vmul.f32 %v1777, 0.020408163
  %v1858 = vmul.f32 %v1796, 0.020408163
  %v1859 = vmul.f32 %v1799, 0.020408163
  %v1860 = vmul.f32 %v1802, 0.020408163
  %v1861 = vmul.f32 %v1805, 0.020408163
  %v1862 = vmul.f32 %v1808, 0.020408163
  %v1863 = vmul.f32 %v1811, 0.020408163
  %v1864 = vmul.f32 %v1814, 0.020408163
  %v1865 = vmul.f32 %v1817, 0.020408163
  %v1866 = vmul.f32 %v1820, 0.020408163
  %v1867 = vmul.f32 %v1823, 0.020408163
  %v1868 = vmul.f32 %v1826, 0.020408163
  %v1869 = vmul.f32 %v1829, 0.020408163
  %v1870 = vmul.f32 %v1832, 0.020408163
  %v1871 = vmul.f32 %v1835, 0.020408163
  %v1872 = vmul.f32 %v1838, 0.020408163
  %v1873 = vmul.f32 %v1841, 0.020408163
  %v1874 = vmul.f32 %v1842, %v1842
  %v1875 = vmul.f32 %v1843, %v1843
  %v1876 = vmul.f32 %v1844, %v1844
  %v1877 = vmul.f32 %v1845, %v1845
  %v1878 = vmul.f32 %v1846, %v1846
  %v1879 = vmul.f32 %v1847, %v1847
  %v1880 = vmul.f32 %v1848, %v1848
  %v1881 = vmul.f32 %v1849, %v1849
  %v1882 = vmul.f32 %v1850, %v1850
  %v1883 = vmul.f32 %v1851, %v1851
  %v1884 = vmul.f32 %v1852, %v1852
  %v1885 = vmul.f32 %v1853, %v1853
  %v1886 = vmul.f32 %v1854, %v1854
  %v1887 = vmul.f32 %v1855, %v1855
  %v1888 = vmul.f32 %v1856, %v1856
  %v1889 = vmul.f32 %v1857, %v1857
  %v1890 = vsub.f32 %v1858, %v1874
  %v1891 = vsub.f32 %v1859, %v1875
  %v1892 = vsub.f32 %v1860, %v1876
  %v1893 = vsub.f32 %v1861, %v1877
  %v1894 = vsub.f32 %v1862, %v1878
  %v1895 = vsub.f32 %v1863, %v1879
  %v1896 = vsub.f32 %v1864, %v1880
  %v1897 = vsub.f32 %v1865, %v1881
  %v1898 = vsub.f32 %v1866, %v1882
  %v1899 = vsub.f32 %v1867, %v1883
  %v1900 = vsub.f32 %v1868, %v1884
  %v1901 = vsub.f32 %v1869, %v1885
  %v1902 = vsub.f32 %v1870, %v1886
  %v1903 = vsub.f32 %v1871, %v1887
  %v1904 = vsub.f32 %v1872, %v1888
  %v1905 = vsub.f32 %v1873, %v1889
  %v1906 = vld [vmem:[%s2] sm:$0xff]
  %v1907 = vld [vmem:[%s2 + $0x8] sm:$0xff]
  %v1908 = vld [vmem:[%s2 + $0x10] sm:$0xff]
  %v1909 = vld [vmem:[%s2 + $0x18] sm:$0xff]
  %v1910 = vld [vmem:[%s2 + $0x20] sm:$0xff]
  %v1911 = vld [vmem:[%s2 + $0x28] sm:$0xff]
  %v1912 = vld [vmem:[%s2 + $0x30] sm:$0xff]
  %v1913 = vld [vmem:[%s2 + $0x38] sm:$0xff]
  %v1914 = vld [vmem:[%s2 + $0x40] sm:$0xff]
  %v1915 = vld [vmem:[%s2 + $0x48] sm:$0xff]
  %v1916 = vld [vmem:[%s2 + $0x50] sm:$0xff]
  %v1917 = vld [vmem:[%s2 + $0x58] sm:$0xff]
  %v1918 = vld [vmem:[%s2 + $0x60] sm:$0xff]
  %v1919 = vld [vmem:[%s2 + $0x68] sm:$0xff]
  %v1920 = vld [vmem:[%s2 + $0x70] sm:$0xff]
  %v1921 = vld [vmem:[%s2 + $0x78] sm:$0xff]
  %v1922 = vadd.f32 %v1890, 1e-05
  %v1923 = vadd.f32 %v1891, 1e-05
  %v1924 = vadd.f32 %v1892, 1e-05
  %v1925 = vadd.f32 %v1893, 1e-05
  %v1926 = vadd.f32 %v1894, 1e-05
  %v1927 = vadd.f32 %v1895, 1e-05
  %v1928 = vadd.f32 %v1896, 1e-05
  %v1929 = vadd.f32 %v1897, 1e-05
  %v1930 = vadd.f32 %v1898, 1e-05
  %v1931 = vadd.f32 %v1899, 1e-05
  %v1932 = vadd.f32 %v1900, 1e-05
  %v1933 = vadd.f32 %v1901, 1e-05
  %v1934 = vadd.f32 %v1902, 1e-05
  %v1935 = vadd.f32 %v1903, 1e-05
  %v1936 = vadd.f32 %v1904, 1e-05
  %v1937 = vadd.f32 %v1905, 1e-05
  %v1938 = vrsqrt.pop %v1922
  %v1939 = vrsqrt.pop %v1923
  %v1940 = vrsqrt.pop %v1924
  %v1941 = vrsqrt.pop %v1925
  %v1942 = vrsqrt.pop %v1926
  %v1943 = vrsqrt.pop %v1927
  %v1944 = vrsqrt.pop %v1928
  %v1945 = vrsqrt.pop %v1929
  %v1946 = vrsqrt.pop %v1930
  %v1947 = vrsqrt.pop %v1931
  %v1948 = vrsqrt.pop %v1932
  %v1949 = vrsqrt.pop %v1933
  %v1950 = vrsqrt.pop %v1934
  %v1951 = vrsqrt.pop %v1935
  %v1952 = vrsqrt.pop %v1936
  %v1953 = vrsqrt.pop %v1937
  %v1954 = vmul.f32 %v1906, %v1938
  %v1955 = vmul.f32 %v1907, %v1939
  %v1956 = vmul.f32 %v1908, %v1940
  %v1957 = vmul.f32 %v1909, %v1941
  %v1958 = vmul.f32 %v1910, %v1942
  %v1959 = vmul.f32 %v1911, %v1943
  %v1960 = vmul.f32 %v1912, %v1944
  %v1961 = vmul.f32 %v1913, %v1945
  %v1962 = vmul.f32 %v1914, %v1946
  %v1963 = vmul.f32 %v1915, %v1947
  %v1964 = vmul.f32 %v1916, %v1948
  %v1965 = vmul.f32 %v1917, %v1949
  %v1966 = vmul.f32 %v1918, %v1950
  %v1967 = vmul.f32 %v1919, %v1951
  %v1968 = vmul.f32 %v1920, %v1952
  %v1969 = vmul.f32 %v1921, %v1953
  %v1970 = vld [vmem:[%s3] sm:$0xff]
  %v1971 = vld [vmem:[%s3 + $0x8] sm:$0xff]
  %v1972 = vld [vmem:[%s3 + $0x10] sm:$0xff]
  %v1973 = vld [vmem:[%s3 + $0x18] sm:$0xff]
  %v1974 = vld [vmem:[%s3 + $0x20] sm:$0xff]
  %v1975 = vld [vmem:[%s3 + $0x28] sm:$0xff]
  %v1976 = vld [vmem:[%s3 + $0x30] sm:$0xff]
  %v1977 = vld [vmem:[%s3 + $0x38] sm:$0xff]
  %v1978 = vld [vmem:[%s3 + $0x40] sm:$0xff]
  %v1979 = vld [vmem:[%s3 + $0x48] sm:$0xff]
  %v1980 = vld [vmem:[%s3 + $0x50] sm:$0xff]
  %v1981 = vld [vmem:[%s3 + $0x58] sm:$0xff]
  %v1982 = vld [vmem:[%s3 + $0x60] sm:$0xff]
  %v1983 = vld [vmem:[%s3 + $0x68] sm:$0xff]
  %v1984 = vld [vmem:[%s3 + $0x70] sm:$0xff]
  %v1985 = vld [vmem:[%s3 + $0x78] sm:$0xff]
  %v1986 = vmul.f32 %v1842, %v1954
  %v1987 = vmul.f32 %v1843, %v1955
  %v1988 = vmul.f32 %v1844, %v1956
  %v1989 = vmul.f32 %v1845, %v1957
  %v1990 = vmul.f32 %v1846, %v1958
  %v1991 = vmul.f32 %v1847, %v1959
  %v1992 = vmul.f32 %v1848, %v1960
  %v1993 = vmul.f32 %v1849, %v1961
  %v1994 = vmul.f32 %v1850, %v1962
  %v1995 = vmul.f32 %v1851, %v1963
  %v1996 = vmul.f32 %v1852, %v1964
  %v1997 = vmul.f32 %v1853, %v1965
  %v1998 = vmul.f32 %v1854, %v1966
  %v1999 = vmul.f32 %v1855, %v1967
  %v2000 = vmul.f32 %v1856, %v1968
  %v2001 = vmul.f32 %v1857, %v1969
  %v2002 = vsub.f32 %v1970, %v1986
  %v2003 = vsub.f32 %v1971, %v1987
  %v2004 = vsub.f32 %v1972, %v1988
  %v2005 = vsub.f32 %v1973, %v1989
  %v2006 = vsub.f32 %v1974, %v1990
  %v2007 = vsub.f32 %v1975, %v1991
  %v2008 = vsub.f32 %v1976, %v1992
  %v2009 = vsub.f32 %v1977, %v1993
  %v2010 = vsub.f32 %v1978, %v1994
  %v2011 = vsub.f32 %v1979, %v1995
  %v2012 = vsub.f32 %v1980, %v1996
  %v2013 = vsub.f32 %v1981, %v1997
  %v2014 = vsub.f32 %v1982, %v1998
  %v2015 = vsub.f32 %v1983, %v1999
  %v2016 = vsub.f32 %v1984, %v2000
  %v2017 = vsub.f32 %v1985, %v2001
  %2019 = vset.pattern.permute.xlu0 0
  %2020 = vperm.xlu0 %2019, %v1954
  %v2021 = vpop.permute.xlu0 %2020
  %2024 = vset.pattern.permute.xlu0 0
  %2025 = vperm.xlu0 %2024, %v1955
  %v2026 = vpop.permute.xlu0 %2025
  %2029 = vset.pattern.permute.xlu0 0
  %2030 = vperm.xlu0 %2029, %v1956
  %v2031 = vpop.permute.xlu0 %2030
  %2034 = vset.pattern.permute.xlu0 0
  %2035 = vperm.xlu0 %2034, %v1957
  %v2036 = vpop.permute.xlu0 %2035
  %2039 = vset.pattern.permute.xlu0 0
  %2040 = vperm.xlu0 %2039, %v1958
  %v2041 = vpop.permute.xlu0 %2040
  %2044 = vset.pattern.permute.xlu0 0
  %2045 = vperm.xlu0 %2044, %v1959
  %v2046 = vpop.permute.xlu0 %2045
  %2049 = vset.pattern.permute.xlu0 0
  %2050 = vperm.xlu0 %2049, %v1960
  %v2051 = vpop.permute.xlu0 %2050
  %2054 = vset.pattern.permute.xlu0 0
  %2055 = vperm.xlu0 %2054, %v1961
  %v2056 = vpop.permute.xlu0 %2055
  %2059 = vset.pattern.permute.xlu0 0
  %2060 = vperm.xlu0 %2059, %v1962
  %v2061 = vpop.permute.xlu0 %2060
  %2064 = vset.pattern.permute.xlu0 0
  %2065 = vperm.xlu0 %2064, %v1963
  %v2066 = vpop.permute.xlu0 %2065
  %2069 = vset.pattern.permute.xlu0 0
  %2070 = vperm.xlu0 %2069, %v1964
  %v2071 = vpop.permute.xlu0 %2070
  %2074 = vset.pattern.permute.xlu0 0
  %2075 = vperm.xlu0 %2074, %v1965
  %v2076 = vpop.permute.xlu0 %2075
  %2079 = vset.pattern.permute.xlu0 0
  %2080 = vperm.xlu0 %2079, %v1966
  %v2081 = vpop.permute.xlu0 %2080
  %2084 = vset.pattern.permute.xlu0 0
  %2085 = vperm.xlu0 %2084, %v1967
  %v2086 = vpop.permute.xlu0 %2085
  %2089 = vset.pattern.permute.xlu0 0
  %2090 = vperm.xlu0 %2089, %v1968
  %v2091 = vpop.permute.xlu0 %2090
  %2094 = vset.pattern.permute.xlu0 0
  %2095 = vperm.xlu0 %2094, %v1969
  %v2096 = vpop.permute.xlu0 %2095
  %v2098 = vmul.f32 %v1651, %v2021
  %v2099 = vmul.f32 %v1656, %v2026
  %v2100 = vmul.f32 %v1661, %v2031
  %v2101 = vmul.f32 %v1666, %v2036
  %v2102 = vmul.f32 %v1671, %v2041
  %v2103 = vmul.f32 %v1676, %v2046
  %v2104 = vmul.f32 %v1681, %v2051
  %v2105 = vmul.f32 %v1686, %v2056
  %v2106 = vmul.f32 %v1691, %v2061
  %v2107 = vmul.f32 %v1696, %v2066
  %v2108 = vmul.f32 %v1701, %v2071
  %v2109 = vmul.f32 %v1706, %v2076
  %v2110 = vmul.f32 %v1711, %v2081
  %v2111 = vmul.f32 %v1716, %v2086
  %v2112 = vmul.f32 %v1721, %v2091
  %v2113 = vmul.f32 %v1726, %v2096
  %2115 = vset.pattern.permute.xlu0 0
  %2116 = vperm.xlu0 %2115, %v2002
  %v2117 = vpop.permute.xlu0 %2116
  %2120 = vset.pattern.permute.xlu0 0
  %2121 = vperm.xlu0 %2120, %v2003
  %v2122 = vpop.permute.xlu0 %2121
  %2125 = vset.pattern.permute.xlu0 0
  %2126 = vperm.xlu0 %2125, %v2004
  %v2127 = vpop.permute.xlu0 %2126
  %2130 = vset.pattern.permute.xlu0 0
  %2131 = vperm.xlu0 %2130, %v2005
  %v2132 = vpop.permute.xlu0 %2131
  %2135 = vset.pattern.permute.xlu0 0
  %2136 = vperm.xlu0 %2135, %v2006
  %v2137 = vpop.permute.xlu0 %2136
  %2140 = vset.pattern.permute.xlu0 0
  %2141 = vperm.xlu0 %2140, %v2007
  %v2142 = vpop.permute.xlu0 %2141
  %2145 = vset.pattern.permute.xlu0 0
  %2146 = vperm.xlu0 %2145, %v2008
  %v2147 = vpop.permute.xlu0 %2146
  %2150 = vset.pattern.permute.xlu0 0
  %2151 = vperm.xlu0 %2150, %v2009
  %v2152 = vpop.permute.xlu0 %2151
  %2155 = vset.pattern.permute.xlu0 0
  %2156 = vperm.xlu0 %2155, %v2010
  %v2157 = vpop.permute.xlu0 %2156
  %2160 = vset.pattern.permute.xlu0 0
  %2161 = vperm.xlu0 %2160, %v2011
  %v2162 = vpop.permute.xlu0 %2161
  %2165 = vset.pattern.permute.xlu0 0
  %2166 = vperm.xlu0 %2165, %v2012
  %v2167 = vpop.permute.xlu0 %2166
  %2170 = vset.pattern.permute.xlu0 0
  %2171 = vperm.xlu0 %2170, %v2013
  %v2172 = vpop.permute.xlu0 %2171
  %2175 = vset.pattern.permute.xlu0 0
  %2176 = vperm.xlu0 %2175, %v2014
  %v2177 = vpop.permute.xlu0 %2176
  %2180 = vset.pattern.permute.xlu0 0
  %2181 = vperm.xlu0 %2180, %v2015
  %v2182 = vpop.permute.xlu0 %2181
  %2185 = vset.pattern.permute.xlu0 0
  %2186 = vperm.xlu0 %2185, %v2016
  %v2187 = vpop.permute.xlu0 %2186
  %2190 = vset.pattern.permute.xlu0 0
  %2191 = vperm.xlu0 %2190, %v2017
  %v2192 = vpop.permute.xlu0 %2191
  %v2194 = vadd.f32 %v2098, %v2117
  %v2195 = vadd.f32 %v2099, %v2122
  %v2196 = vadd.f32 %v2100, %v2127
  %v2197 = vadd.f32 %v2101, %v2132
  %v2198 = vadd.f32 %v2102, %v2137
  %v2199 = vadd.f32 %v2103, %v2142
  %v2200 = vadd.f32 %v2104, %v2147
  %v2201 = vadd.f32 %v2105, %v2152
  %v2202 = vadd.f32 %v2106, %v2157
  %v2203 = vadd.f32 %v2107, %v2162
  %v2204 = vadd.f32 %v2108, %v2167
  %v2205 = vadd.f32 %v2109, %v2172
  %v2206 = vadd.f32 %v2110, %v2177
  %v2207 = vadd.f32 %v2111, %v2182
  %v2208 = vadd.f32 %v2112, %v2187
  %v2209 = vadd.f32 %v2113, %v2192
  %v2210 = vmax.f32 %v2194, 0.0
  %v2211 = vmax.f32 %v2195, 0.0
  %v2212 = vmax.f32 %v2196, 0.0
  %v2213 = vmax.f32 %v2197, 0.0
  %v2214 = vmax.f32 %v2198, 0.0
  %v2215 = vmax.f32 %v2199, 0.0
  %v2216 = vmax.f32 %v2200, 0.0
  %v2217 = vmax.f32 %v2201, 0.0
  %v2218 = vmax.f32 %v2202, 0.0
  %v2219 = vmax.f32 %v2203, 0.0
  %v2220 = vmax.f32 %v2204, 0.0
  %v2221 = vmax.f32 %v2205, 0.0
  %v2222 = vmax.f32 %v2206, 0.0
  %v2223 = vmax.f32 %v2207, 0.0
  %v2224 = vmax.f32 %v2208, 0.0
  %v2225 = vmax.f32 %v2209, 0.0
  %2226 = vst.msk [vmem:[%s4] sm:$0xff] %vm1729, %v2210
  %2227 = vst.msk [vmem:[%s4 + $0x8] sm:$0xff] %vm1729, %v2211
  %2228 = vst.msk [vmem:[%s4 + $0x10] sm:$0xff] %vm1729, %v2212
  %2229 = vst.msk [vmem:[%s4 + $0x18] sm:$0xff] %vm1729, %v2213
  %2230 = vst.msk [vmem:[%s4 + $0x20] sm:$0xff] %vm1729, %v2214
  %2231 = vst.msk [vmem:[%s4 + $0x28] sm:$0xff] %vm1729, %v2215
  %2232 = vst.msk [vmem:[%s4 + $0x30] sm:$0xff] %vm1729, %v2216
  %2233 = vst.msk [vmem:[%s4 + $0x38] sm:$0xff] %vm1729, %v2217
  %2234 = vst.msk [vmem:[%s4 + $0x40] sm:$0xff] %vm1729, %v2218
  %2235 = vst.msk [vmem:[%s4 + $0x48] sm:$0xff] %vm1729, %v2219
  %2236 = vst.msk [vmem:[%s4 + $0x50] sm:$0xff] %vm1729, %v2220
  %2237 = vst.msk [vmem:[%s4 + $0x58] sm:$0xff] %vm1729, %v2221
  %2238 = vst.msk [vmem:[%s4 + $0x60] sm:$0xff] %vm1729, %v2222
  %2239 = vst.msk [vmem:[%s4 + $0x68] sm:$0xff] %vm1729, %v2223
  %2240 = vst.msk [vmem:[%s4 + $0x70] sm:$0xff] %vm1729, %v2224
  %2241 = vst.msk [vmem:[%s4 + $0x78] sm:$0xff] %vm1729, %v2225
  // Predicated region
  $region18: #{tpu_custom_call.1} parent=0 // pred_check
    _
  $region19: #{tpu_custom_call.1} parent=0 // pred_check_branch
    %2243 = sbr.rel (0) target = $region21
  $region20: #{tpu_custom_call.1} parent=0 // pred_region
    _
  $region21: #{tpu_custom_call.1} parent=0 // pred_fallthru
    _
  // Predicated region
  $region22: #{tpu_custom_call.1} parent=0 // pred_check
    _
  $region23: #{tpu_custom_call.1} parent=0 // pred_check_branch
    %2245 = sbr.rel (0) target = $region25
  $region24: #{tpu_custom_call.1} parent=0 // pred_region
    _
  $region25: #{tpu_custom_call.1} parent=0 // pred_fallthru
    _

</llo_original>
